<compile_context>
chip_gen: v6e
topology: v6e:2x2x1
jax: 0.10.0
libtpu: 0.0.40
codegen_flags: <defaults>
</compile_context>

<pallas_src>
import functools

import jax
import jax.numpy as jnp
from jax import lax
from jax.experimental import pallas as pl
from jax.experimental.pallas import tpu as pltpu

_EPS = 1e-5
_LANE = 128


def _decoder_bottleneck_kernel(x_top_ref, x_mid_ref, x_bot_ref,
                               w1_ref, s1_ref, b1_ref,
                               w2_ref, s2_ref, b2_ref,
                               w3_ref, s3_ref, b3_ref,
                               o_ref):
    """One (batch, row-tile) grid step.

    x_top : (1, W, Cin)   f32   clamped halo row above the tile
    x_mid : (TH, W, Cin)  f32   the row tile (also the residual)
    x_bot : (1, W, Cin)   f32   clamped halo row below the tile
    w1    : (Cin, Cw)     bf16  1x1 conv1
    s1/b1 : (1, Cw)       f32   folded bn1 scale / bias
    w2    : (3, 3*Cw, Cw) bf16  3x3 conv2, ky-grouped im2col weight ((kx,ci) rows)
    s2/b2 : (1, Cw)       f32   folded bn2 scale / bias (conv2 bias folded in)
    w3    : (Cw, Cout)    bf16  1x1 conv3
    s3/b3 : (1, Cout)     f32   folded bn3 scale / bias
    o_ref : (TH, W, Cout) f32   output row tile
    """
    TH, W, Cin = x_mid_ref.shape
    Cw = w1_ref.shape[1]
    Cout = w3_ref.shape[1]

    h_id = pl.program_id(1)
    is_first = h_id == 0
    is_last = h_id == pl.num_programs(1) - 1

    # ---- halo'd row stack: (TH+2, W, Cin) -----------------------------------
    xh = jnp.concatenate([x_top_ref[...], x_mid_ref[...], x_bot_ref[...]],
                         axis=0)

    # ---- conv1 (1x1) + bn1 + relu: bf16 MXU operands, f32 accumulate --------
    h1 = jnp.dot(xh.reshape((TH + 2) * W, Cin).astype(jnp.bfloat16),
                 w1_ref[...], preferred_element_type=jnp.float32)
    h1 = jnp.maximum(h1 * s1_ref[...] + b1_ref[...], 0.0)
    h1 = h1.reshape(TH + 2, W, Cw)

    # Halo rows outside the image are conv2's spatial zero padding; zero them
    # with a single predicated select (applied *after* bn1/relu, because the
    # zero padding is on conv2's input, not on x).
    ridx = lax.broadcasted_iota(jnp.int32, (TH + 2, 1, 1), 0)
    keep = jnp.logical_and(
        jnp.logical_or(ridx != 0, jnp.logical_not(is_first)),
        jnp.logical_or(ridx != TH + 1, jnp.logical_not(is_last)))
    h1 = jnp.where(keep, h1, 0.0).astype(jnp.bfloat16)

    # ---- conv2 (3x3, pad=1), grouped by ky: 3 matmuls with K = 3*Cw ---------
    zcol = jnp.zeros((TH, 1, Cw), jnp.bfloat16)
    h2 = jnp.zeros((TH * W, Cw), jnp.float32)
    for ky in range(3):
        rows = h1[ky:ky + TH]                                         # (TH, W, Cw)
        left = jnp.concatenate([zcol, rows[:, :W - 1, :]], axis=1)    # kx = 0
        right = jnp.concatenate([rows[:, 1:, :], zcol], axis=1)       # kx = 2
        col = jnp.concatenate([left, rows, right], axis=-1)           # (TH, W, 3*Cw)
        h2 = h2 + jnp.dot(col.reshape(TH * W, 3 * Cw), w2_ref[ky],
                          preferred_element_type=jnp.float32)
    h2 = jnp.maximum(h2 * s2_ref[...] + b2_ref[...], 0.0)

    # ---- conv3 (1x1) + bn3 + residual + relu --------------------------------
    h3 = jnp.dot(h2.astype(jnp.bfloat16), w3_ref[...],
                 preferred_element_type=jnp.float32)
    h3 = h3 * s3_ref[...] + b3_ref[...]

    res = x_mid_ref[...].reshape(TH * W, Cin)          # Cin == Cout (asserted)
    out = jnp.maximum(h3 + res, 0.0)
    o_ref[...] = out.reshape(TH, W, Cout).astype(o_ref.dtype)


def _fold_bn(gamma, beta, mean, var, eps=_EPS):
    s = gamma / jnp.sqrt(var + eps)
    return s, beta - mean * s


def _round_up(v, m):
    return (v + m - 1) // m * m


def _vmem_limit_bytes():
    """Generation-aware VMEM cap: ~0.75 * physical, at most 100 MiB."""
    try:
        cap = int(pltpu.get_tpu_info().vmem_capacity_bytes)
    except Exception:  # interpret mode / older runtimes: assume the small part
        cap = 64 * 1024 * 1024
    return min(int(cap * 0.75), 100 * 1024 * 1024)


def _vmem_estimate(th, W, cin_p, cw_p, cout_p):
    """Rough per-step VMEM bytes (blocks double-buffered + live intermediates)."""
    f32, bf16 = 4, 2
    rows = (th + 2) * W
    x_blocks = 2 * rows * cin_p * f32                     # mid + halos, x2 bufs
    out_blk = 2 * th * W * cout_p * f32                   # output, x2 bufs
    weights = 2 * (cin_p * cw_p + 9 * cw_p * cw_p + cw_p * cout_p) * bf16
    inter = (rows * cin_p * (f32 + bf16)                  # xh concat + bf16 cast
             + rows * cw_p * (f32 + bf16)                 # h1 f32 + bf16
             + th * W * 3 * cw_p * bf16                   # per-ky col slab
             + th * W * cw_p * f32                        # h2 accumulator
             + th * W * cout_p * 2 * f32)                 # h3 + out
    return x_blocks + out_blk + weights + inter


def _pick_tile_h(H, W, cin_p, cw_p, cout_p, vmem_limit):
    """Largest row tile (64/32/16/8) dividing H that fits ~60% of the limit."""
    budget = int(vmem_limit * 0.6)
    candidates = [t for t in (64, 32, 16, 8) if H % t == 0]
    for t in candidates:
        if _vmem_estimate(t, W, cin_p, cw_p, cout_p) <= budget:
            return t
    if candidates:
        return candidates[-1]
    return H


def init_params(key, inplanes, planes, base_width=64, groups=1):
    """Deterministic synthetic parameters, PyTorch-shaped (OIHW conv weights)."""
    width = int(inplanes / 4 * (base_width / 64.0)) * groups
    ks = jax.random.split(key, 16)
    rnd = lambda k, shape, sc=0.1: sc * jax.random.normal(k, shape, jnp.float32)
    pos = lambda k, shape: 0.5 + jax.random.uniform(k, shape, jnp.float32)
    p = {
        "conv1_w": rnd(ks[0], (width, inplanes, 1, 1)),
        "conv2_w": rnd(ks[1], (width, width, 3, 3)),
        "conv2_b": rnd(ks[2], (width,)),
        "conv3_w": rnd(ks[3], (planes, width, 1, 1)),
        "bn1": (pos(ks[4], (width,)), rnd(ks[5], (width,)),
                rnd(ks[6], (width,)), pos(ks[7], (width,))),
        "bn2": (pos(ks[8], (width,)), rnd(ks[9], (width,)),
                rnd(ks[10], (width,)), pos(ks[11], (width,))),
        "bn3": (pos(ks[12], (planes,)), rnd(ks[13], (planes,)),
                rnd(ks[14], (planes,)), pos(ks[15], (planes,))),
    }
    return p, width


@functools.partial(jax.jit, static_argnames=("tile_h",))
def decoder_bottleneck(x_nchw, params, tile_h=None):
    """Pallas DecoderBottleneck forward. x_nchw: (N, Cin, H, W) f32, NCHW."""
    N, Cin, H, W = x_nchw.shape
    width = params["conv1_w"].shape[0]
    Cout = params["conv3_w"].shape[0]
    assert Cout == Cin, "residual add requires planes == inplanes (upsample=None)"

    # Pad every channel dim to the 128-lane width (zero channels are exact).
    cin_p = _round_up(Cin, _LANE)
    cw_p = _round_up(width, _LANE)
    cout_p = _round_up(Cout, _LANE)

    vmem_limit = _vmem_limit_bytes()
    if tile_h is None:
        tile_h = _pick_tile_h(H, W, cin_p, cw_p, cout_p, vmem_limit)
    assert H % tile_h == 0, "tile_h must divide H"

    # TODO(synk): the NCHW<->NHWC transposes below are extra HBM round trips; an
    #             NHWC end-to-end pipeline would remove them but changes the
    #             module's NCHW interface, so they are kept at the boundary.
    x_nhwc = jnp.transpose(x_nchw, (0, 2, 3, 1)).astype(jnp.float32)
    x_nhwc = jnp.pad(x_nhwc, ((0, 0), (0, 0), (0, 0), (0, cin_p - Cin)))

    # Weight prep: bf16 MXU operands, kernel-friendly layouts.
    w1 = jnp.transpose(params["conv1_w"][:, :, 0, 0], (1, 0))            # (Cin, Cw)
    w1 = jnp.pad(w1, ((0, cin_p - Cin), (0, cw_p - width))).astype(jnp.bfloat16)
    w2 = jnp.transpose(params["conv2_w"], (2, 3, 1, 0))                  # (3,3,Ci,Co)
    w2 = jnp.pad(w2, ((0, 0), (0, 0), (0, cw_p - width), (0, cw_p - width)))
    w2 = w2.reshape(3, 3 * cw_p, cw_p).astype(jnp.bfloat16)              # ky-grouped
    w3 = jnp.transpose(params["conv3_w"][:, :, 0, 0], (1, 0))            # (Cw, Cout)
    w3 = jnp.pad(w3, ((0, cw_p - width), (0, cout_p - Cout))).astype(jnp.bfloat16)

    # Folded eval-mode BN affines; conv2 bias folded into bn2's bias.
    s1, b1 = _fold_bn(*params["bn1"])
    s2, b2 = _fold_bn(*params["bn2"])
    b2 = b2 + s2 * params["conv2_b"]
    s3, b3 = _fold_bn(*params["bn3"])
    vec = lambda v, n: jnp.pad(v, (0, n - v.shape[0])).reshape(1, n).astype(jnp.float32)
    s1, b1 = vec(s1, cw_p), vec(b1, cw_p)
    s2, b2 = vec(s2, cw_p), vec(b2, cw_p)
    s3, b3 = vec(s3, cout_p), vec(b3, cout_p)

    grid = (N, H // tile_h)
    const = lambda *shape: pl.BlockSpec(shape, lambda n, h: (0,) * len(shape))

    # Halo'd row-tile blocks for x: VMEM scales with tile_h, not H*W.
    top_map = lambda n, h: (n, jnp.maximum(h * tile_h - 1, 0), 0, 0)
    mid_map = lambda n, h: (n, h, 0, 0)
    bot_map = lambda n, h: (n, jnp.minimum((h + 1) * tile_h, H - 1), 0, 0)

    out_nhwc = pl.pallas_call(
        _decoder_bottleneck_kernel,
        out_shape=jax.ShapeDtypeStruct((N, H, W, cout_p), jnp.float32),
        grid=grid,
        in_specs=[
            pl.BlockSpec((None, 1, W, cin_p), top_map),        # clamped top halo
            pl.BlockSpec((None, tile_h, W, cin_p), mid_map),   # row tile + residual
            pl.BlockSpec((None, 1, W, cin_p), bot_map),        # clamped bottom halo
            const(cin_p, cw_p),          # w1
            const(1, cw_p),              # s1
            const(1, cw_p),              # b1
            const(3, 3 * cw_p, cw_p),    # w2 (ky-grouped im2col)
            const(1, cw_p),              # s2
            const(1, cw_p),              # b2 (includes conv2 bias)
            const(cw_p, cout_p),         # w3
            const(1, cout_p),            # s3
            const(1, cout_p),            # b3
        ],
        out_specs=pl.BlockSpec((None, tile_h, W, cout_p),
                               lambda n, h: (n, h, 0, 0)),
        compiler_params=pltpu.CompilerParams(
            dimension_semantics=("parallel", "parallel"),
            vmem_limit_bytes=vmem_limit,
        ),
    )(x_nhwc, x_nhwc, x_nhwc, w1, s1, b1, w2, s2, b2, w3, s3, b3)

    return jnp.transpose(out_nhwc[..., :Cout], (0, 3, 1, 2))


def reference_forward(x_nchw, params):
    """Pure-JAX (XLA conv, f32) reference in NCHW, eval-mode BN."""
    def bn(y, stats):
        g, b, m, v = stats
        s = g / jnp.sqrt(v + _EPS)
        return y * s[None, :, None, None] + (b - m * s)[None, :, None, None]

    dn = ("NCHW", "OIHW", "NCHW")
    out = lax.conv_general_dilated(x_nchw, params["conv1_w"], (1, 1), "VALID",
                                   dimension_numbers=dn)
    out = jax.nn.relu(bn(out, params["bn1"]))
    out = lax.conv_general_dilated(out, params["conv2_w"], (1, 1),
                                   ((1, 1), (1, 1)), dimension_numbers=dn)
    out = out + params["conv2_b"][None, :, None, None]
    out = jax.nn.relu(bn(out, params["bn2"]))
    out = lax.conv_general_dilated(out, params["conv3_w"], (1, 1), "VALID",
                                   dimension_numbers=dn)
    out = bn(out, params["bn3"])
    out = jax.nn.relu(out + x_nchw)
    return out


if __name__ == "__main__":
    key = jax.random.PRNGKey(0)
    k_param, k_x = jax.random.split(key)

    # Small shapes consistent with the module: inplanes=16 -> width=4, planes=16.
    N, inplanes, planes, H, W = 2, 16, 16, 16, 16
    params, width = init_params(k_param, inplanes, planes)
    x = jax.random.normal(k_x, (N, inplanes, H, W), jnp.float32)

    ref = jax.block_until_ready(reference_forward(x, params))

    # Explicit tile_h=8 -> 2 row tiles per image: exercises interior halos and
    # the top/bottom boundary masking.
    out = jax.block_until_ready(decoder_bottleneck(x, params, tile_h=8))
    assert out.shape == (N, planes, H, W)
    max_err = float(jnp.max(jnp.abs(out - ref)))
    # bf16 MXU operands (f32 accumulation) vs a pure-f32 reference.
    assert jnp.allclose(out, ref, atol=3e-2, rtol=3e-2), max_err

    # Default path: largest row tile that fits the generation-aware VMEM budget.
    out2 = jax.block_until_ready(decoder_bottleneck(x, params))
    assert jnp.allclose(out2, ref, atol=3e-2, rtol=3e-2)

    print("KERNEL_OK")
</pallas_src>

<mosaic_0001>
module attributes {stable_mosaic.version = 11 : i64} {
  func.func @_decoder_bottleneck_kernel(%arg0: i32, %arg1: i32, %arg2: memref<1x1x16x128xf32, #tpu.memory_space<vmem>>, %arg3: memref<1x8x16x128xf32, #tpu.memory_space<vmem>>, %arg4: memref<1x1x16x128xf32, #tpu.memory_space<vmem>>, %arg5: memref<128x128xbf16, #tpu.memory_space<vmem>>, %arg6: memref<1x128xf32, #tpu.memory_space<vmem>>, %arg7: memref<1x128xf32, #tpu.memory_space<vmem>>, %arg8: memref<3x384x128xbf16, #tpu.memory_space<vmem>>, %arg9: memref<1x128xf32, #tpu.memory_space<vmem>>, %arg10: memref<1x128xf32, #tpu.memory_space<vmem>>, %arg11: memref<128x128xbf16, #tpu.memory_space<vmem>>, %arg12: memref<1x128xf32, #tpu.memory_space<vmem>>, %arg13: memref<1x128xf32, #tpu.memory_space<vmem>>, %arg14: memref<1x8x16x128xf32, #tpu.memory_space<vmem>>) attributes {dimension_semantics = [#tpu.dimension_semantics<parallel>, #tpu.dimension_semantics<parallel>], iteration_bounds = array<i64: 2, 2>, scalar_prefetch = 0 : i64, scratch_operands = 0 : i64, tpu.core_type = #tpu.core_type<tc>, window_params = [{transform_indices = @transform_0, window_bounds = array<i64: 1, 1, 16, 128>}, {transform_indices = @transform_1, window_bounds = array<i64: 1, 8, 16, 128>}, {transform_indices = @transform_2, window_bounds = array<i64: 1, 1, 16, 128>}, {pipeline_mode = #tpu.pipeline_mode<synchronous>, transform_indices = @transform_3, window_bounds = array<i64: 128, 128>}, {pipeline_mode = #tpu.pipeline_mode<synchronous>, transform_indices = @transform_4, window_bounds = array<i64: 1, 128>}, {pipeline_mode = #tpu.pipeline_mode<synchronous>, transform_indices = @transform_5, window_bounds = array<i64: 1, 128>}, {pipeline_mode = #tpu.pipeline_mode<synchronous>, transform_indices = @transform_6, window_bounds = array<i64: 3, 384, 128>}, {pipeline_mode = #tpu.pipeline_mode<synchronous>, transform_indices = @transform_7, window_bounds = array<i64: 1, 128>}, {pipeline_mode = #tpu.pipeline_mode<synchronous>, transform_indices = @transform_8, window_bounds = array<i64: 1, 128>}, {pipeline_mode = #tpu.pipeline_mode<synchronous>, transform_indices = @transform_9, window_bounds = array<i64: 128, 128>}, {pipeline_mode = #tpu.pipeline_mode<synchronous>, transform_indices = @transform_10, window_bounds = array<i64: 1, 128>}, {pipeline_mode = #tpu.pipeline_mode<synchronous>, transform_indices = @transform_11, window_bounds = array<i64: 1, 128>}, {transform_indices = @transform_12, window_bounds = array<i64: 1, 8, 16, 128>}]} {
    %c0_i32 = arith.constant 0 : i32
    %0 = arith.cmpi eq, %arg1, %c0_i32 : i32
    %c1_i32 = arith.constant 1 : i32
    %1 = arith.cmpi eq, %arg1, %c1_i32 : i32
    %c0 = arith.constant 0 : index
    %c0_0 = arith.constant 0 : index
    %c0_1 = arith.constant 0 : index
    %c0_2 = arith.constant 0 : index
    %2 = vector.load %arg2[%c0, %c0_0, %c0_1, %c0_2] : memref<1x1x16x128xf32, #tpu.memory_space<vmem>>, vector<1x1x16x128xf32>
    %3 = vector.shape_cast %2 : vector<1x1x16x128xf32> to vector<1x16x128xf32>
    %c0_3 = arith.constant 0 : index
    %c0_4 = arith.constant 0 : index
    %c0_5 = arith.constant 0 : index
    %c0_6 = arith.constant 0 : index
    %4 = vector.load %arg3[%c0_3, %c0_4, %c0_5, %c0_6] : memref<1x8x16x128xf32, #tpu.memory_space<vmem>>, vector<1x8x16x128xf32>
    %5 = vector.shape_cast %4 : vector<1x8x16x128xf32> to vector<8x16x128xf32>
    %c0_7 = arith.constant 0 : index
    %c0_8 = arith.constant 0 : index
    %c0_9 = arith.constant 0 : index
    %c0_10 = arith.constant 0 : index
    %6 = vector.load %arg4[%c0_7, %c0_8, %c0_9, %c0_10] : memref<1x1x16x128xf32, #tpu.memory_space<vmem>>, vector<1x1x16x128xf32>
    %7 = vector.shape_cast %6 : vector<1x1x16x128xf32> to vector<1x16x128xf32>
    %8 = tpu.concatenate %3, %5, %7 in 0 : vector<1x16x128xf32>, vector<8x16x128xf32>, vector<1x16x128xf32> -> vector<10x16x128xf32>
    %9 = vector.shape_cast %8 : vector<10x16x128xf32> to vector<160x128xf32>
    %10 = arith.truncf %9 : vector<160x128xf32> to vector<160x128xbf16>
    %c0_11 = arith.constant 0 : index
    %c0_12 = arith.constant 0 : index
    %11 = vector.load %arg5[%c0_11, %c0_12] : memref<128x128xbf16, #tpu.memory_space<vmem>>, vector<128x128xbf16>
    %cst = arith.constant dense<0.000000e+00> : vector<160x128xf32>
    %12 = tpu.matmul %10, %11, %cst {dimension_numbers = #tpu.dot_dimension_numbers<[1], [0], [0], [1], [0, 0, 1, 1], [], []>} : vector<160x128xbf16>, vector<128x128xbf16>, vector<160x128xf32> -> vector<160x128xf32>
    %c0_13 = arith.constant 0 : index
    %c0_14 = arith.constant 0 : index
    %13 = vector.load %arg6[%c0_13, %c0_14] : memref<1x128xf32, #tpu.memory_space<vmem>>, vector<1x128xf32>
    %14 = vector.broadcast %13 : vector<1x128xf32> to vector<160x128xf32>
    %15 = arith.mulf %12, %14 : vector<160x128xf32>
    %c0_15 = arith.constant 0 : index
    %c0_16 = arith.constant 0 : index
    %16 = vector.load %arg7[%c0_15, %c0_16] : memref<1x128xf32, #tpu.memory_space<vmem>>, vector<1x128xf32>
    %17 = vector.broadcast %16 : vector<1x128xf32> to vector<160x128xf32>
    %18 = arith.addf %15, %17 : vector<160x128xf32>
    %cst_17 = arith.constant 0.000000e+00 : f32
    %19 = vector.broadcast %cst_17 : f32 to vector<160x128xf32>
    %20 = arith.maximumf %18, %19 : vector<160x128xf32>
    %21 = vector.shape_cast %20 : vector<160x128xf32> to vector<10x16x128xf32>
    %22 = tpu.iota {dimensions = array<i32: 0>} : vector<10x1x1xi32>
    %c0_i32_18 = arith.constant 0 : i32
    %23 = vector.broadcast %c0_i32_18 : i32 to vector<10x1x1xi32>
    %24 = arith.cmpi ne, %22, %23 : vector<10x1x1xi32>
    %true = arith.constant true
    %25 = arith.xori %0, %true : i1
    %26 = vector.broadcast %25 : i1 to vector<10x1x1xi1>
    %27 = arith.ori %24, %26 : vector<10x1x1xi1>
    %c9_i32 = arith.constant 9 : i32
    %28 = vector.broadcast %c9_i32 : i32 to vector<10x1x1xi32>
    %29 = arith.cmpi ne, %22, %28 : vector<10x1x1xi32>
    %true_19 = arith.constant true
    %30 = arith.xori %1, %true_19 : i1
    %31 = vector.broadcast %30 : i1 to vector<10x1x1xi1>
    %32 = arith.ori %29, %31 : vector<10x1x1xi1>
    %33 = arith.andi %27, %32 : vector<10x1x1xi1>
    %cst_20 = arith.constant 0.000000e+00 : f32
    %34 = vector.shape_cast %33 : vector<10x1x1xi1> to vector<10x1x1xi1>
    %35 = vector.broadcast %34 : vector<10x1x1xi1> to vector<10x16x128xi1>
    %36 = vector.broadcast %cst_20 : f32 to vector<10x16x128xf32>
    %37 = arith.select %35, %21, %36 : vector<10x16x128xi1>, vector<10x16x128xf32>
    %38 = arith.truncf %37 : vector<10x16x128xf32> to vector<10x16x128xbf16>
    %cst_21 = arith.constant 0.000000e+00 : bf16
    %39 = vector.broadcast %cst_21 : bf16 to vector<8x1x128xbf16>
    %cst_22 = arith.constant 0.000000e+00 : f32
    %40 = vector.broadcast %cst_22 : f32 to vector<128x128xf32>
    %41 = vector.extract_strided_slice %38 {offsets = [0, 0, 0], sizes = [8, 16, 128], strides = [1, 1, 1]} : vector<10x16x128xbf16> to vector<8x16x128xbf16>
    %42 = vector.extract_strided_slice %41 {offsets = [0, 0, 0], sizes = [8, 15, 128], strides = [1, 1, 1]} : vector<8x16x128xbf16> to vector<8x15x128xbf16>
    %43 = tpu.concatenate %39, %42 in 1 : vector<8x1x128xbf16>, vector<8x15x128xbf16> -> vector<8x16x128xbf16>
    %44 = vector.extract_strided_slice %41 {offsets = [0, 1, 0], sizes = [8, 15, 128], strides = [1, 1, 1]} : vector<8x16x128xbf16> to vector<8x15x128xbf16>
    %45 = tpu.concatenate %44, %39 in 1 : vector<8x15x128xbf16>, vector<8x1x128xbf16> -> vector<8x16x128xbf16>
    %46 = tpu.concatenate %43, %41, %45 in 2 : vector<8x16x128xbf16>, vector<8x16x128xbf16>, vector<8x16x128xbf16> -> vector<8x16x384xbf16>
    %47 = vector.shape_cast %46 : vector<8x16x384xbf16> to vector<128x384xbf16>
    %c0_23 = arith.constant 0 : index
    %c0_24 = arith.constant 0 : index
    %c0_25 = arith.constant 0 : index
    %48 = vector.load %arg8[%c0_23, %c0_24, %c0_25] : memref<3x384x128xbf16, #tpu.memory_space<vmem>>, vector<1x384x128xbf16>
    %49 = vector.shape_cast %48 : vector<1x384x128xbf16> to vector<384x128xbf16>
    %cst_26 = arith.constant dense<0.000000e+00> : vector<128x128xf32>
    %50 = tpu.matmul %47, %49, %cst_26 {dimension_numbers = #tpu.dot_dimension_numbers<[1], [0], [0], [1], [0, 0, 1, 1], [], []>} : vector<128x384xbf16>, vector<384x128xbf16>, vector<128x128xf32> -> vector<128x128xf32>
    %51 = arith.addf %40, %50 : vector<128x128xf32>
    %52 = vector.extract_strided_slice %38 {offsets = [1, 0, 0], sizes = [8, 16, 128], strides = [1, 1, 1]} : vector<10x16x128xbf16> to vector<8x16x128xbf16>
    %53 = vector.extract_strided_slice %52 {offsets = [0, 0, 0], sizes = [8, 15, 128], strides = [1, 1, 1]} : vector<8x16x128xbf16> to vector<8x15x128xbf16>
    %54 = tpu.concatenate %39, %53 in 1 : vector<8x1x128xbf16>, vector<8x15x128xbf16> -> vector<8x16x128xbf16>
    %55 = vector.extract_strided_slice %52 {offsets = [0, 1, 0], sizes = [8, 15, 128], strides = [1, 1, 1]} : vector<8x16x128xbf16> to vector<8x15x128xbf16>
    %56 = tpu.concatenate %55, %39 in 1 : vector<8x15x128xbf16>, vector<8x1x128xbf16> -> vector<8x16x128xbf16>
    %57 = tpu.concatenate %54, %52, %56 in 2 : vector<8x16x128xbf16>, vector<8x16x128xbf16>, vector<8x16x128xbf16> -> vector<8x16x384xbf16>
    %58 = vector.shape_cast %57 : vector<8x16x384xbf16> to vector<128x384xbf16>
    %c1 = arith.constant 1 : index
    %c0_27 = arith.constant 0 : index
    %c0_28 = arith.constant 0 : index
    %59 = vector.load %arg8[%c1, %c0_27, %c0_28] : memref<3x384x128xbf16, #tpu.memory_space<vmem>>, vector<1x384x128xbf16>
    %60 = vector.shape_cast %59 : vector<1x384x128xbf16> to vector<384x128xbf16>
    %cst_29 = arith.constant dense<0.000000e+00> : vector<128x128xf32>
    %61 = tpu.matmul %58, %60, %cst_29 {dimension_numbers = #tpu.dot_dimension_numbers<[1], [0], [0], [1], [0, 0, 1, 1], [], []>} : vector<128x384xbf16>, vector<384x128xbf16>, vector<128x128xf32> -> vector<128x128xf32>
    %62 = arith.addf %51, %61 : vector<128x128xf32>
    %63 = vector.extract_strided_slice %38 {offsets = [2, 0, 0], sizes = [8, 16, 128], strides = [1, 1, 1]} : vector<10x16x128xbf16> to vector<8x16x128xbf16>
    %64 = vector.extract_strided_slice %63 {offsets = [0, 0, 0], sizes = [8, 15, 128], strides = [1, 1, 1]} : vector<8x16x128xbf16> to vector<8x15x128xbf16>
    %65 = tpu.concatenate %39, %64 in 1 : vector<8x1x128xbf16>, vector<8x15x128xbf16> -> vector<8x16x128xbf16>
    %66 = vector.extract_strided_slice %63 {offsets = [0, 1, 0], sizes = [8, 15, 128], strides = [1, 1, 1]} : vector<8x16x128xbf16> to vector<8x15x128xbf16>
    %67 = tpu.concatenate %66, %39 in 1 : vector<8x15x128xbf16>, vector<8x1x128xbf16> -> vector<8x16x128xbf16>
    %68 = tpu.concatenate %65, %63, %67 in 2 : vector<8x16x128xbf16>, vector<8x16x128xbf16>, vector<8x16x128xbf16> -> vector<8x16x384xbf16>
    %69 = vector.shape_cast %68 : vector<8x16x384xbf16> to vector<128x384xbf16>
    %c2 = arith.constant 2 : index
    %c0_30 = arith.constant 0 : index
    %c0_31 = arith.constant 0 : index
    %70 = vector.load %arg8[%c2, %c0_30, %c0_31] : memref<3x384x128xbf16, #tpu.memory_space<vmem>>, vector<1x384x128xbf16>
    %71 = vector.shape_cast %70 : vector<1x384x128xbf16> to vector<384x128xbf16>
    %cst_32 = arith.constant dense<0.000000e+00> : vector<128x128xf32>
    %72 = tpu.matmul %69, %71, %cst_32 {dimension_numbers = #tpu.dot_dimension_numbers<[1], [0], [0], [1], [0, 0, 1, 1], [], []>} : vector<128x384xbf16>, vector<384x128xbf16>, vector<128x128xf32> -> vector<128x128xf32>
    %73 = arith.addf %62, %72 : vector<128x128xf32>
    %c0_33 = arith.constant 0 : index
    %c0_34 = arith.constant 0 : index
    %74 = vector.load %arg9[%c0_33, %c0_34] : memref<1x128xf32, #tpu.memory_space<vmem>>, vector<1x128xf32>
    %75 = vector.broadcast %74 : vector<1x128xf32> to vector<128x128xf32>
    %76 = arith.mulf %73, %75 : vector<128x128xf32>
    %c0_35 = arith.constant 0 : index
    %c0_36 = arith.constant 0 : index
    %77 = vector.load %arg10[%c0_35, %c0_36] : memref<1x128xf32, #tpu.memory_space<vmem>>, vector<1x128xf32>
    %78 = vector.broadcast %77 : vector<1x128xf32> to vector<128x128xf32>
    %79 = arith.addf %76, %78 : vector<128x128xf32>
    %cst_37 = arith.constant 0.000000e+00 : f32
    %80 = vector.broadcast %cst_37 : f32 to vector<128x128xf32>
    %81 = arith.maximumf %79, %80 : vector<128x128xf32>
    %82 = arith.truncf %81 : vector<128x128xf32> to vector<128x128xbf16>
    %c0_38 = arith.constant 0 : index
    %c0_39 = arith.constant 0 : index
    %83 = vector.load %arg11[%c0_38, %c0_39] : memref<128x128xbf16, #tpu.memory_space<vmem>>, vector<128x128xbf16>
    %cst_40 = arith.constant dense<0.000000e+00> : vector<128x128xf32>
    %84 = tpu.matmul %82, %83, %cst_40 {dimension_numbers = #tpu.dot_dimension_numbers<[1], [0], [0], [1], [0, 0, 1, 1], [], []>} : vector<128x128xbf16>, vector<128x128xbf16>, vector<128x128xf32> -> vector<128x128xf32>
    %c0_41 = arith.constant 0 : index
    %c0_42 = arith.constant 0 : index
    %85 = vector.load %arg12[%c0_41, %c0_42] : memref<1x128xf32, #tpu.memory_space<vmem>>, vector<1x128xf32>
    %86 = vector.broadcast %85 : vector<1x128xf32> to vector<128x128xf32>
    %87 = arith.mulf %84, %86 : vector<128x128xf32>
    %c0_43 = arith.constant 0 : index
    %c0_44 = arith.constant 0 : index
    %88 = vector.load %arg13[%c0_43, %c0_44] : memref<1x128xf32, #tpu.memory_space<vmem>>, vector<1x128xf32>
    %89 = vector.broadcast %88 : vector<1x128xf32> to vector<128x128xf32>
    %90 = arith.addf %87, %89 : vector<128x128xf32>
    %c0_45 = arith.constant 0 : index
    %c0_46 = arith.constant 0 : index
    %c0_47 = arith.constant 0 : index
    %c0_48 = arith.constant 0 : index
    %91 = vector.load %arg3[%c0_45, %c0_46, %c0_47, %c0_48] : memref<1x8x16x128xf32, #tpu.memory_space<vmem>>, vector<1x8x16x128xf32>
    %92 = vector.shape_cast %91 : vector<1x8x16x128xf32> to vector<8x16x128xf32>
    %93 = vector.shape_cast %92 : vector<8x16x128xf32> to vector<128x128xf32>
    %94 = arith.addf %90, %93 : vector<128x128xf32>
    %cst_49 = arith.constant 0.000000e+00 : f32
    %95 = vector.broadcast %cst_49 : f32 to vector<128x128xf32>
    %96 = arith.maximumf %94, %95 : vector<128x128xf32>
    %97 = vector.shape_cast %96 : vector<128x128xf32> to vector<8x16x128xf32>
    %c0_50 = arith.constant 0 : index
    %c0_51 = arith.constant 0 : index
    %c0_52 = arith.constant 0 : index
    %c0_53 = arith.constant 0 : index
    %98 = vector.load %arg14[%c0_50, %c0_51, %c0_52, %c0_53] : memref<1x8x16x128xf32, #tpu.memory_space<vmem>>, vector<1x8x16x128xf32>
    %99 = vector.shape_cast %98 : vector<1x8x16x128xf32> to vector<8x16x128xf32>
    %100 = vector.shape_cast %97 : vector<8x16x128xf32> to vector<1x8x16x128xf32>
    tpu.vector_store %arg14[%c0_50, %c0_51, %c0_52, %c0_53], %100 {strides = array<i32>} : memref<1x8x16x128xf32, #tpu.memory_space<vmem>>, vector<1x8x16x128xf32>,
    return
  }
  func.func @transform_0(%arg0: i32, %arg1: i32) -> (i32, i32, i32, i32) {
    %c8_i32 = arith.constant 8 : i32
    %0 = arith.muli %arg1, %c8_i32 : i32
    %c1_i32 = arith.constant 1 : i32
    %1 = arith.subi %0, %c1_i32 : i32
    %c0_i32 = arith.constant 0 : i32
    %2 = arith.maxsi %1, %c0_i32 : i32
    %c0_i32_0 = arith.constant 0 : i32
    %c0_i32_1 = arith.constant 0 : i32
    %c0_i32_2 = arith.constant 0 : i32
    return %arg0, %2, %c0_i32_0, %c0_i32_1 : i32, i32, i32, i32
  }
  func.func @transform_1(%arg0: i32, %arg1: i32) -> (i32, i32, i32, i32) {
    %c0_i32 = arith.constant 0 : i32
    %c0_i32_0 = arith.constant 0 : i32
    %c0_i32_1 = arith.constant 0 : i32
    return %arg0, %arg1, %c0_i32, %c0_i32_0 : i32, i32, i32, i32
  }
  func.func @transform_2(%arg0: i32, %arg1: i32) -> (i32, i32, i32, i32) {
    %c1_i32 = arith.constant 1 : i32
    %0 = arith.addi %arg1, %c1_i32 : i32
    %c8_i32 = arith.constant 8 : i32
    %1 = arith.muli %0, %c8_i32 : i32
    %c15_i32 = arith.constant 15 : i32
    %2 = arith.minsi %1, %c15_i32 : i32
    %c0_i32 = arith.constant 0 : i32
    %c0_i32_0 = arith.constant 0 : i32
    %c0_i32_1 = arith.constant 0 : i32
    return %arg0, %2, %c0_i32, %c0_i32_0 : i32, i32, i32, i32
  }
  func.func @transform_3(%arg0: i32, %arg1: i32) -> (i32, i32) {
    %c0_i32 = arith.constant 0 : i32
    %c0_i32_0 = arith.constant 0 : i32
    %c0_i32_1 = arith.constant 0 : i32
    return %c0_i32, %c0_i32_0 : i32, i32
  }
  func.func @transform_4(%arg0: i32, %arg1: i32) -> (i32, i32) {
    %c0_i32 = arith.constant 0 : i32
    %c0_i32_0 = arith.constant 0 : i32
    %c0_i32_1 = arith.constant 0 : i32
    return %c0_i32, %c0_i32_0 : i32, i32
  }
  func.func @transform_5(%arg0: i32, %arg1: i32) -> (i32, i32) {
    %c0_i32 = arith.constant 0 : i32
    %c0_i32_0 = arith.constant 0 : i32
    %c0_i32_1 = arith.constant 0 : i32
    return %c0_i32, %c0_i32_0 : i32, i32
  }
  func.func @transform_6(%arg0: i32, %arg1: i32) -> (i32, i32, i32) {
    %c0_i32 = arith.constant 0 : i32
    %c0_i32_0 = arith.constant 0 : i32
    %c0_i32_1 = arith.constant 0 : i32
    %c0_i32_2 = arith.constant 0 : i32
    return %c0_i32, %c0_i32_0, %c0_i32_1 : i32, i32, i32
  }
  func.func @transform_7(%arg0: i32, %arg1: i32) -> (i32, i32) {
    %c0_i32 = arith.constant 0 : i32
    %c0_i32_0 = arith.constant 0 : i32
    %c0_i32_1 = arith.constant 0 : i32
    return %c0_i32, %c0_i32_0 : i32, i32
  }
  func.func @transform_8(%arg0: i32, %arg1: i32) -> (i32, i32) {
    %c0_i32 = arith.constant 0 : i32
    %c0_i32_0 = arith.constant 0 : i32
    %c0_i32_1 = arith.constant 0 : i32
    return %c0_i32, %c0_i32_0 : i32, i32
  }
  func.func @transform_9(%arg0: i32, %arg1: i32) -> (i32, i32) {
    %c0_i32 = arith.constant 0 : i32
    %c0_i32_0 = arith.constant 0 : i32
    %c0_i32_1 = arith.constant 0 : i32
    return %c0_i32, %c0_i32_0 : i32, i32
  }
  func.func @transform_10(%arg0: i32, %arg1: i32) -> (i32, i32) {
    %c0_i32 = arith.constant 0 : i32
    %c0_i32_0 = arith.constant 0 : i32
    %c0_i32_1 = arith.constant 0 : i32
    return %c0_i32, %c0_i32_0 : i32, i32
  }
  func.func @transform_11(%arg0: i32, %arg1: i32) -> (i32, i32) {
    %c0_i32 = arith.constant 0 : i32
    %c0_i32_0 = arith.constant 0 : i32
    %c0_i32_1 = arith.constant 0 : i32
    return %c0_i32, %c0_i32_0 : i32, i32
  }
  func.func @transform_12(%arg0: i32, %arg1: i32) -> (i32, i32, i32, i32) {
    %c0_i32 = arith.constant 0 : i32
    %c0_i32_0 = arith.constant 0 : i32
    %c0_i32_1 = arith.constant 0 : i32
    return %arg0, %arg1, %c0_i32, %c0_i32_0 : i32, i32, i32, i32
  }
}

</mosaic_0001>

<llo_original>
// kernel: decoder_bottleneck.1
$region0: #{decoder_bottleneck.1}
  #allocation0 [shape = 'u32[]', space=smem, size = 0x4, offset = 0x4, fixed_abs, tag = 'smem constant byte address 0x4 - core index']
  #allocation1 [shape = 'u32[144,128]{1,0:T(1,128)}', space=vmem, size = 0x12000, scoped, tag = 'internal scratch']
  %s0 = inlined_call_operand.vmem [shape: f32[2,16,16,128], index: 0, kind: input, shape index: {}, may-alias: {0,1,2}]
  %s1 = inlined_call_operand.vmem [shape: f32[2,16,16,128], index: 1, kind: input, shape index: {}, may-alias: {0,1,2}]
  %s2 = inlined_call_operand.vmem [shape: f32[2,16,16,128], index: 2, kind: input, shape index: {}, may-alias: {0,1,2}]
  %s3 = inlined_call_operand.vmem [shape: bf16[128,128], index: 3, kind: input, shape index: {}]
  %s4 = inlined_call_operand.vmem [shape: f32[1,128], index: 4, kind: input, shape index: {}]
  %s5 = inlined_call_operand.vmem [shape: f32[1,128], index: 5, kind: input, shape index: {}]
  %s6 = inlined_call_operand.vmem [shape: bf16[3,384,128], index: 6, kind: input, shape index: {}]
  %s7 = inlined_call_operand.vmem [shape: f32[1,128], index: 7, kind: input, shape index: {}]
  %s8 = inlined_call_operand.vmem [shape: f32[1,128], index: 8, kind: input, shape index: {}]
  %s9 = inlined_call_operand.vmem [shape: bf16[128,128], index: 9, kind: input, shape index: {}]
  %s10 = inlined_call_operand.vmem [shape: f32[1,128], index: 10, kind: input, shape index: {}]
  %s11 = inlined_call_operand.vmem [shape: f32[1,128], index: 11, kind: input, shape index: {}]
  %s12 = inlined_call_operand.vmem [shape: f32[2,16,16,128], index: 12, kind: output, shape index: {}]
  %s13 = sld [smem:[#allocation0]]
  $region81: #{decoder_bottleneck.1} parent=0
    _
  %s15 = ssub.s32 1, %s13
  %s16 = scalar_select 0, %s15, %s13
  loop: start=0, step=1, limit=6
  $region2: #{decoder_bottleneck.1} parent=0 // loop_pre_header
    _
  $region3: #{decoder_bottleneck.1} parent=0 // loop_header
    %s18 = sphi 0, %s22
    %p19 = scmp.ge.s32.totalorder %s18, 6
    %s25 = sphi 0, %s37
    %s26 = sphi 0, %s33
    %s27 = sphi 0, %s25
    %s28 = sphi 0, %s26
    %s29 = sphi 0, %s27
    %s30 = sphi 0, %s28
    %s50 = sphi 0, %s52
    %s53 = sphi 0, %s50
    %s54 = sphi 0, %s53
    %s70 = sphi 0, %s54
    %s78 = sphi 0, %s80
    %s81 = sphi 0, %s78
    %s82 = sphi 0, %s81
    %s98 = sphi 0, %s82
    %s114 = sphi 0, %s116
    %s117 = sphi 0, %s114
    %s118 = sphi 0, %s117
    %s134 = sphi 0, %s118
    %s138 = sphi 0, %s138
    %s140 = sphi 0, %s138
    %s141 = sphi 0, %s140
    %s155 = sphi 0, %s141
    %s159 = sphi 0, %s159
    %s161 = sphi 0, %s159
    %s162 = sphi 0, %s161
    %s176 = sphi 0, %s162
    %s180 = sphi 0, %s180
    %s182 = sphi 0, %s180
    %s183 = sphi 0, %s182
    %s197 = sphi 0, %s183
    %s201 = sphi 0, %s201
    %s203 = sphi 0, %s201
    %s204 = sphi 0, %s203
    %s218 = sphi 0, %s204
    %s222 = sphi 0, %s222
    %s224 = sphi 0, %s222
    %s225 = sphi 0, %s224
    %s239 = sphi 0, %s225
    %s243 = sphi 0, %s243
    %s245 = sphi 0, %s243
    %s246 = sphi 0, %s245
    %s260 = sphi 0, %s246
    %s264 = sphi 0, %s264
    %s266 = sphi 0, %s264
    %s267 = sphi 0, %s266
    %s281 = sphi 0, %s267
    %s285 = sphi 0, %s285
    %s287 = sphi 0, %s285
    %s288 = sphi 0, %s287
    %s302 = sphi 0, %s288
    %s306 = sphi 0, %s306
    %s308 = sphi 0, %s306
    %s309 = sphi 0, %s308
    %s323 = sphi 0, %s309
    %s331 = sphi 0, %s333
    %s334 = sphi 0, %s331
    %s335 = sphi 0, %s334
    %s351 = sphi 0, %s335
  $region4: #{decoder_bottleneck.1} parent=0 // loop_header_branch
    %21 = sbr.rel (%p19) target = $region8
  $region5: #{decoder_bottleneck.1} parent=0 // loop_body
    %s23 = ssub.s32 %s18, 1
    %s24 = ssub.s32 %s18, 2
    %s31 = sadd.s32 1, %s26
    %p32 = scmp.ge.s32.totalorder %s31, 2
    %s33 = scalar_select %p32, 0, %s31
    %s34 = sadd.s32 1, %s25
    %s35 = scalar_select %p32, %s34, %s25
    %p36 = scmp.ge.s32.totalorder %s35, 2
    %s37 = scalar_select %p36, 0, %s35
    %s38 = smul.u32 %s26, 8
    %s39 = ssub.s32 %s38, 1
    %p40 = scmp.gt.s32.totalorder %s39, 0
    %s41 = scalar_select %p40, %s39, 0
    %s42 = smul.u32 %s33, 8
    %s43 = ssub.s32 %s42, 1
    %p44 = scmp.gt.s32.totalorder %s43, 0
    %s45 = scalar_select %p44, %s43, 0
    %s46 = ssub.s32 %s25, %s37
    %s47 = ssub.s32 %s41, %s45
    %s48 = sor.u32 %s46, %s47
    %p49 = scmp.eq.s32.totalorder %s48, 0
    %s51 = sadd.s32 %s50, 1
    %s52 = scalar_select %p49, %s50, %s51
    %p55 = pneg %p49
    %p56 = scmp.eq.s32.totalorder %s18, 3
    %p57 = por %p55, %p56
    %p58 = scmp.ne.s32.totalorder %s50, %s53
    %p59 = scmp.eq.s32.totalorder %s18, 0
    %p60 = por %p58, %p59
    %p61 = scmp.ne.s32.totalorder %s50, %s53
    %p62 = scmp.eq.s32.totalorder %s23, 3
    %p63 = por %p61, %p62
    %p64 = scmp.ne.s32.totalorder %s53, %s54
    %p65 = scmp.eq.s32.totalorder %s23, 0
    %p66 = por %p64, %p65
    %p67 = scmp.ne.s32.totalorder %s53, %s54
    %p68 = scmp.eq.s32.totalorder %s24, 3
    %p69 = por %p67, %p68
    %p71 = scmp.ne.s32.totalorder %s54, %s70
    %p72 = scmp.eq.s32.totalorder %s24, 0
    %p73 = por %p71, %p72
    %s74 = ssub.s32 %s25, %s37
    %s75 = ssub.s32 %s26, %s33
    %s76 = sor.u32 %s74, %s75
    %p77 = scmp.eq.s32.totalorder %s76, 0
    %s79 = sadd.s32 %s78, 1
    %s80 = scalar_select %p77, %s78, %s79
    %p83 = pneg %p77
    %p84 = scmp.eq.s32.totalorder %s18, 3
    %p85 = por %p83, %p84
    %p86 = scmp.ne.s32.totalorder %s78, %s81
    %p87 = scmp.eq.s32.totalorder %s18, 0
    %p88 = por %p86, %p87
    %p89 = scmp.ne.s32.totalorder %s78, %s81
    %p90 = scmp.eq.s32.totalorder %s23, 3
    %p91 = por %p89, %p90
    %p92 = scmp.ne.s32.totalorder %s81, %s82
    %p93 = scmp.eq.s32.totalorder %s23, 0
    %p94 = por %p92, %p93
    %p95 = scmp.ne.s32.totalorder %s81, %s82
    %p96 = scmp.eq.s32.totalorder %s24, 3
    %p97 = por %p95, %p96
    %p99 = scmp.ne.s32.totalorder %s82, %s98
    %p100 = scmp.eq.s32.totalorder %s24, 0
    %p101 = por %p99, %p100
    %s102 = sadd.s32 %s26, 1
    %s103 = smul.u32 %s102, 8
    %p104 = scmp.lt.s32.totalorder %s103, 15
    %s105 = scalar_select %p104, %s103, 15
    %s106 = sadd.s32 %s33, 1
    %s107 = smul.u32 %s106, 8
    %p108 = scmp.lt.s32.totalorder %s107, 15
    %s109 = scalar_select %p108, %s107, 15
    %s110 = ssub.s32 %s25, %s37
    %s111 = ssub.s32 %s105, %s109
    %s112 = sor.u32 %s110, %s111
    %p113 = scmp.eq.s32.totalorder %s112, 0
    %s115 = sadd.s32 %s114, 1
    %s116 = scalar_select %p113, %s114, %s115
    %p119 = pneg %p113
    %p120 = scmp.eq.s32.totalorder %s18, 3
    %p121 = por %p119, %p120
    %p122 = scmp.ne.s32.totalorder %s114, %s117
    %p123 = scmp.eq.s32.totalorder %s18, 0
    %p124 = por %p122, %p123
    %p125 = scmp.ne.s32.totalorder %s114, %s117
    %p126 = scmp.eq.s32.totalorder %s23, 3
    %p127 = por %p125, %p126
    %p128 = scmp.ne.s32.totalorder %s117, %s118
    %p129 = scmp.eq.s32.totalorder %s23, 0
    %p130 = por %p128, %p129
    %p131 = scmp.ne.s32.totalorder %s117, %s118
    %p132 = scmp.eq.s32.totalorder %s24, 3
    %p133 = por %p131, %p132
    %p135 = scmp.ne.s32.totalorder %s118, %s134
    %p136 = scmp.eq.s32.totalorder %s24, 0
    %p137 = por %p135, %p136
    %s139 = sadd.s32 %s138, 1
    %p142 = scmp.eq.s32.totalorder %s18, 3
    %p143 = scmp.ne.s32.totalorder %s138, %s140
    %p144 = scmp.eq.s32.totalorder %s18, 0
    %p145 = por %p143, %p144
    %p146 = scmp.ne.s32.totalorder %s138, %s140
    %p147 = scmp.eq.s32.totalorder %s23, 3
    %p148 = por %p146, %p147
    %p149 = scmp.ne.s32.totalorder %s140, %s141
    %p150 = scmp.eq.s32.totalorder %s23, 0
    %p151 = por %p149, %p150
    %p152 = scmp.ne.s32.totalorder %s140, %s141
    %p153 = scmp.eq.s32.totalorder %s24, 3
    %p154 = por %p152, %p153
    %p156 = scmp.ne.s32.totalorder %s141, %s155
    %p157 = scmp.eq.s32.totalorder %s24, 0
    %p158 = por %p156, %p157
    %s160 = sadd.s32 %s159, 1
    %p163 = scmp.eq.s32.totalorder %s18, 3
    %p164 = scmp.ne.s32.totalorder %s159, %s161
    %p165 = scmp.eq.s32.totalorder %s18, 0
    %p166 = por %p164, %p165
    %p167 = scmp.ne.s32.totalorder %s159, %s161
    %p168 = scmp.eq.s32.totalorder %s23, 3
    %p169 = por %p167, %p168
    %p170 = scmp.ne.s32.totalorder %s161, %s162
    %p171 = scmp.eq.s32.totalorder %s23, 0
    %p172 = por %p170, %p171
    %p173 = scmp.ne.s32.totalorder %s161, %s162
    %p174 = scmp.eq.s32.totalorder %s24, 3
    %p175 = por %p173, %p174
    %p177 = scmp.ne.s32.totalorder %s162, %s176
    %p178 = scmp.eq.s32.totalorder %s24, 0
    %p179 = por %p177, %p178
    %s181 = sadd.s32 %s180, 1
    %p184 = scmp.eq.s32.totalorder %s18, 3
    %p185 = scmp.ne.s32.totalorder %s180, %s182
    %p186 = scmp.eq.s32.totalorder %s18, 0
    %p187 = por %p185, %p186
    %p188 = scmp.ne.s32.totalorder %s180, %s182
    %p189 = scmp.eq.s32.totalorder %s23, 3
    %p190 = por %p188, %p189
    %p191 = scmp.ne.s32.totalorder %s182, %s183
    %p192 = scmp.eq.s32.totalorder %s23, 0
    %p193 = por %p191, %p192
    %p194 = scmp.ne.s32.totalorder %s182, %s183
    %p195 = scmp.eq.s32.totalorder %s24, 3
    %p196 = por %p194, %p195
    %p198 = scmp.ne.s32.totalorder %s183, %s197
    %p199 = scmp.eq.s32.totalorder %s24, 0
    %p200 = por %p198, %p199
    %s202 = sadd.s32 %s201, 1
    %p205 = scmp.eq.s32.totalorder %s18, 3
    %p206 = scmp.ne.s32.totalorder %s201, %s203
    %p207 = scmp.eq.s32.totalorder %s18, 0
    %p208 = por %p206, %p207
    %p209 = scmp.ne.s32.totalorder %s201, %s203
    %p210 = scmp.eq.s32.totalorder %s23, 3
    %p211 = por %p209, %p210
    %p212 = scmp.ne.s32.totalorder %s203, %s204
    %p213 = scmp.eq.s32.totalorder %s23, 0
    %p214 = por %p212, %p213
    %p215 = scmp.ne.s32.totalorder %s203, %s204
    %p216 = scmp.eq.s32.totalorder %s24, 3
    %p217 = por %p215, %p216
    %p219 = scmp.ne.s32.totalorder %s204, %s218
    %p220 = scmp.eq.s32.totalorder %s24, 0
    %p221 = por %p219, %p220
    %s223 = sadd.s32 %s222, 1
    %p226 = scmp.eq.s32.totalorder %s18, 3
    %p227 = scmp.ne.s32.totalorder %s222, %s224
    %p228 = scmp.eq.s32.totalorder %s18, 0
    %p229 = por %p227, %p228
    %p230 = scmp.ne.s32.totalorder %s222, %s224
    %p231 = scmp.eq.s32.totalorder %s23, 3
    %p232 = por %p230, %p231
    %p233 = scmp.ne.s32.totalorder %s224, %s225
    %p234 = scmp.eq.s32.totalorder %s23, 0
    %p235 = por %p233, %p234
    %p236 = scmp.ne.s32.totalorder %s224, %s225
    %p237 = scmp.eq.s32.totalorder %s24, 3
    %p238 = por %p236, %p237
    %p240 = scmp.ne.s32.totalorder %s225, %s239
    %p241 = scmp.eq.s32.totalorder %s24, 0
    %p242 = por %p240, %p241
    %s244 = sadd.s32 %s243, 1
    %p247 = scmp.eq.s32.totalorder %s18, 3
    %p248 = scmp.ne.s32.totalorder %s243, %s245
    %p249 = scmp.eq.s32.totalorder %s18, 0
    %p250 = por %p248, %p249
    %p251 = scmp.ne.s32.totalorder %s243, %s245
    %p252 = scmp.eq.s32.totalorder %s23, 3
    %p253 = por %p251, %p252
    %p254 = scmp.ne.s32.totalorder %s245, %s246
    %p255 = scmp.eq.s32.totalorder %s23, 0
    %p256 = por %p254, %p255
    %p257 = scmp.ne.s32.totalorder %s245, %s246
    %p258 = scmp.eq.s32.totalorder %s24, 3
    %p259 = por %p257, %p258
    %p261 = scmp.ne.s32.totalorder %s246, %s260
    %p262 = scmp.eq.s32.totalorder %s24, 0
    %p263 = por %p261, %p262
    %s265 = sadd.s32 %s264, 1
    %p268 = scmp.eq.s32.totalorder %s18, 3
    %p269 = scmp.ne.s32.totalorder %s264, %s266
    %p270 = scmp.eq.s32.totalorder %s18, 0
    %p271 = por %p269, %p270
    %p272 = scmp.ne.s32.totalorder %s264, %s266
    %p273 = scmp.eq.s32.totalorder %s23, 3
    %p274 = por %p272, %p273
    %p275 = scmp.ne.s32.totalorder %s266, %s267
    %p276 = scmp.eq.s32.totalorder %s23, 0
    %p277 = por %p275, %p276
    %p278 = scmp.ne.s32.totalorder %s266, %s267
    %p279 = scmp.eq.s32.totalorder %s24, 3
    %p280 = por %p278, %p279
    %p282 = scmp.ne.s32.totalorder %s267, %s281
    %p283 = scmp.eq.s32.totalorder %s24, 0
    %p284 = por %p282, %p283
    %s286 = sadd.s32 %s285, 1
    %p289 = scmp.eq.s32.totalorder %s18, 3
    %p290 = scmp.ne.s32.totalorder %s285, %s287
    %p291 = scmp.eq.s32.totalorder %s18, 0
    %p292 = por %p290, %p291
    %p293 = scmp.ne.s32.totalorder %s285, %s287
    %p294 = scmp.eq.s32.totalorder %s23, 3
    %p295 = por %p293, %p294
    %p296 = scmp.ne.s32.totalorder %s287, %s288
    %p297 = scmp.eq.s32.totalorder %s23, 0
    %p298 = por %p296, %p297
    %p299 = scmp.ne.s32.totalorder %s287, %s288
    %p300 = scmp.eq.s32.totalorder %s24, 3
    %p301 = por %p299, %p300
    %p303 = scmp.ne.s32.totalorder %s288, %s302
    %p304 = scmp.eq.s32.totalorder %s24, 0
    %p305 = por %p303, %p304
    %s307 = sadd.s32 %s306, 1
    %p310 = scmp.eq.s32.totalorder %s18, 3
    %p311 = scmp.ne.s32.totalorder %s306, %s308
    %p312 = scmp.eq.s32.totalorder %s18, 0
    %p313 = por %p311, %p312
    %p314 = scmp.ne.s32.totalorder %s306, %s308
    %p315 = scmp.eq.s32.totalorder %s23, 3
    %p316 = por %p314, %p315
    %p317 = scmp.ne.s32.totalorder %s308, %s309
    %p318 = scmp.eq.s32.totalorder %s23, 0
    %p319 = por %p317, %p318
    %p320 = scmp.ne.s32.totalorder %s308, %s309
    %p321 = scmp.eq.s32.totalorder %s24, 3
    %p322 = por %p320, %p321
    %p324 = scmp.ne.s32.totalorder %s309, %s323
    %p325 = scmp.eq.s32.totalorder %s24, 0
    %p326 = por %p324, %p325
    %s327 = ssub.s32 %s25, %s37
    %s328 = ssub.s32 %s26, %s33
    %s329 = sor.u32 %s327, %s328
    %p330 = scmp.eq.s32.totalorder %s329, 0
    %s332 = sadd.s32 %s331, 1
    %s333 = scalar_select %p330, %s331, %s332
    %p336 = pneg %p330
    %p337 = scmp.eq.s32.totalorder %s18, 3
    %p338 = por %p336, %p337
    %p339 = scmp.ne.s32.totalorder %s331, %s334
    %p340 = scmp.eq.s32.totalorder %s18, 0
    %p341 = por %p339, %p340
    %p342 = scmp.ne.s32.totalorder %s331, %s334
    %p343 = scmp.eq.s32.totalorder %s23, 3
    %p344 = por %p342, %p343
    %p345 = scmp.ne.s32.totalorder %s334, %s335
    %p346 = scmp.eq.s32.totalorder %s23, 0
    %p347 = por %p345, %p346
    %p348 = scmp.ne.s32.totalorder %s334, %s335
    %p349 = scmp.eq.s32.totalorder %s24, 3
    %p350 = por %p348, %p349
    %p352 = scmp.ne.s32.totalorder %s335, %s351
    %p353 = scmp.eq.s32.totalorder %s24, 0
    %p354 = por %p352, %p353
    %p355 = scmp.le.s32.totalorder 1, %s18
    %p356 = scmp.lt.s32.totalorder %s18, 5
    %p357 = pnand %p355, %p356
    %p358 = pneg %p357
    // Predicated region
    $region9: #{decoder_bottleneck.1} parent=5 // pred_check
      _
    $region10: #{decoder_bottleneck.1} parent=5 // pred_check_branch
      %360 = sbr.rel (%p357) target = $region12
    $region11: #{decoder_bottleneck.1} parent=5 // pred_region
      %s361 = ssub.s32 %s18, 1
      // Predicated region
      $region13: #{decoder_bottleneck.1} parent=11 // pred_check
        %p362 = pneg %p151
      $region14: #{decoder_bottleneck.1} parent=11 // pred_check_branch
        %364 = sbr.rel (%p362) target = $region16
      $region15: #{decoder_bottleneck.1} parent=11 // pred_region
        _
      $region16: #{decoder_bottleneck.1} parent=11 // pred_fallthru
        _
      // Predicated region
      $region17: #{decoder_bottleneck.1} parent=11 // pred_check
        %p365 = pneg %p172
      $region18: #{decoder_bottleneck.1} parent=11 // pred_check_branch
        %367 = sbr.rel (%p365) target = $region20
      $region19: #{decoder_bottleneck.1} parent=11 // pred_region
        _
      $region20: #{decoder_bottleneck.1} parent=11 // pred_fallthru
        _
      // Predicated region
      $region21: #{decoder_bottleneck.1} parent=11 // pred_check
        %p368 = pneg %p193
      $region22: #{decoder_bottleneck.1} parent=11 // pred_check_branch
        %370 = sbr.rel (%p368) target = $region24
      $region23: #{decoder_bottleneck.1} parent=11 // pred_region
        _
      $region24: #{decoder_bottleneck.1} parent=11 // pred_fallthru
        _
      // Predicated region
      $region25: #{decoder_bottleneck.1} parent=11 // pred_check
        %p371 = pneg %p214
      $region26: #{decoder_bottleneck.1} parent=11 // pred_check_branch
        %373 = sbr.rel (%p371) target = $region28
      $region27: #{decoder_bottleneck.1} parent=11 // pred_region
        _
      $region28: #{decoder_bottleneck.1} parent=11 // pred_fallthru
        _
      // Predicated region
      $region29: #{decoder_bottleneck.1} parent=11 // pred_check
        %p374 = pneg %p235
      $region30: #{decoder_bottleneck.1} parent=11 // pred_check_branch
        %376 = sbr.rel (%p374) target = $region32
      $region31: #{decoder_bottleneck.1} parent=11 // pred_region
        _
      $region32: #{decoder_bottleneck.1} parent=11 // pred_fallthru
        _
      // Predicated region
      $region33: #{decoder_bottleneck.1} parent=11 // pred_check
        %p377 = pneg %p256
      $region34: #{decoder_bottleneck.1} parent=11 // pred_check_branch
        %379 = sbr.rel (%p377) target = $region36
      $region35: #{decoder_bottleneck.1} parent=11 // pred_region
        _
      $region36: #{decoder_bottleneck.1} parent=11 // pred_fallthru
        _
      // Predicated region
      $region37: #{decoder_bottleneck.1} parent=11 // pred_check
        %p380 = pneg %p277
      $region38: #{decoder_bottleneck.1} parent=11 // pred_check_branch
        %382 = sbr.rel (%p380) target = $region40
      $region39: #{decoder_bottleneck.1} parent=11 // pred_region
        _
      $region40: #{decoder_bottleneck.1} parent=11 // pred_fallthru
        _
      // Predicated region
      $region41: #{decoder_bottleneck.1} parent=11 // pred_check
        %p383 = pneg %p298
      $region42: #{decoder_bottleneck.1} parent=11 // pred_check_branch
        %385 = sbr.rel (%p383) target = $region44
      $region43: #{decoder_bottleneck.1} parent=11 // pred_region
        _
      $region44: #{decoder_bottleneck.1} parent=11 // pred_fallthru
        _
      // Predicated region
      $region45: #{decoder_bottleneck.1} parent=11 // pred_check
        %p386 = pneg %p319
      $region46: #{decoder_bottleneck.1} parent=11 // pred_check_branch
        %388 = sbr.rel (%p386) target = $region48
      $region47: #{decoder_bottleneck.1} parent=11 // pred_region
        _
      $region48: #{decoder_bottleneck.1} parent=11 // pred_fallthru
        _
    $region12: #{decoder_bottleneck.1} parent=5 // pred_fallthru
      _
    %p389 = scmp.lt.s32.totalorder %s18, 4
    // Predicated region
    $region49: #{decoder_bottleneck.1} parent=5 // pred_check
      %p390 = pneg %p389
    $region50: #{decoder_bottleneck.1} parent=5 // pred_check_branch
      %392 = sbr.rel (%p390) target = $region52
    $region51: #{decoder_bottleneck.1} parent=5 // pred_region
      // Predicated region
      $region53: #{decoder_bottleneck.1} parent=51 // pred_check
        %p393 = pneg %p60
      $region54: #{decoder_bottleneck.1} parent=51 // pred_check_branch
        %395 = sbr.rel (%p393) target = $region56
      $region55: #{decoder_bottleneck.1} parent=51 // pred_region
        %s396 = smul.u32 %s26, 8
        %s397 = ssub.s32 %s396, 1
        %p398 = scmp.gt.s32.totalorder %s397, 0
        %s399 = scalar_select %p398, %s397, 0
        %p400 = scmp.lt.s32.totalorder %s25, 1
        %s401 = scalar_select %p400, %s25, 1
        %p402 = scmp.lt.s32.totalorder %s399, 15
        %s403 = scalar_select %p402, %s399, 15
        %s404 = smul.addr %s403, 2
        %s405 = smul.addr %s401, 32
        %s406 = sadd.s32 %s404, %s405
        %s407 = smul.addr %s406, 8
        %s408 = scalar_lea.vmem %s0, %s407
        %s409 = smul.u32 %s26, 8
        %s410 = ssub.s32 %s409, 1
        %p411 = scmp.gt.s32.totalorder %s410, 0
        %s412 = scalar_select %p411, %s410, 0
      $region56: #{decoder_bottleneck.1} parent=51 // pred_fallthru
        _
      // Predicated region
      $region57: #{decoder_bottleneck.1} parent=51 // pred_check
        %p413 = pneg %p88
      $region58: #{decoder_bottleneck.1} parent=51 // pred_check_branch
        %415 = sbr.rel (%p413) target = $region60
      $region59: #{decoder_bottleneck.1} parent=51 // pred_region
        %s416 = smul.u32 8, %s26
        %p417 = scmp.lt.s32.totalorder %s25, 1
        %s418 = scalar_select %p417, %s25, 1
        %p419 = scmp.lt.s32.totalorder %s416, 15
        %s420 = scalar_select %p419, %s416, 15
        %s421 = smul.addr %s420, 2
        %s422 = smul.addr %s418, 32
        %s423 = sadd.s32 %s421, %s422
        %s424 = smul.addr %s423, 8
        %s425 = scalar_lea.vmem %s1, %s424
        %s426 = smul.u32 8, %s26
      $region60: #{decoder_bottleneck.1} parent=51 // pred_fallthru
        _
      // Predicated region
      $region61: #{decoder_bottleneck.1} parent=51 // pred_check
        %p427 = pneg %p124
      $region62: #{decoder_bottleneck.1} parent=51 // pred_check_branch
        %429 = sbr.rel (%p427) target = $region64
      $region63: #{decoder_bottleneck.1} parent=51 // pred_region
        %s430 = sadd.s32 %s26, 1
        %s431 = smul.u32 %s430, 8
        %p432 = scmp.lt.s32.totalorder %s431, 15
        %s433 = scalar_select %p432, %s431, 15
        %p434 = scmp.lt.s32.totalorder %s25, 1
        %s435 = scalar_select %p434, %s25, 1
        %p436 = scmp.lt.s32.totalorder %s433, 15
        %s437 = scalar_select %p436, %s433, 15
        %s438 = smul.addr %s437, 2
        %s439 = smul.addr %s435, 32
        %s440 = sadd.s32 %s438, %s439
        %s441 = smul.addr %s440, 8
        %s442 = scalar_lea.vmem %s2, %s441
        %s443 = sadd.s32 %s26, 1
        %s444 = smul.u32 %s443, 8
        %p445 = scmp.lt.s32.totalorder %s444, 15
        %s446 = scalar_select %p445, %s444, 15
      $region64: #{decoder_bottleneck.1} parent=51 // pred_fallthru
        _
    $region52: #{decoder_bottleneck.1} parent=5 // pred_fallthru
      _
    %p447 = scmp.le.s32.totalorder 1, %s18
    %p448 = scmp.lt.s32.totalorder %s18, 5
    %p449 = pnand %p447, %p448
    %p450 = pneg %p449
    // Predicated region
    $region65: #{decoder_bottleneck.1} parent=5 // pred_check
      _
    $region66: #{decoder_bottleneck.1} parent=5 // pred_check_branch
      %452 = sbr.rel (%p449) target = $region68
    $region67: #{decoder_bottleneck.1} parent=5 // pred_region
      %s453 = ssub.s32 %s18, 1
      %s454 = smul.u32 %s28, 8
      %s455 = ssub.s32 %s454, 1
      %p456 = scmp.gt.s32.totalorder %s455, 0
      %s457 = scalar_select %p456, %s455, 0
      %p458 = scmp.lt.s32.totalorder %s27, 1
      %s459 = scalar_select %p458, %s27, 1
      %p460 = scmp.lt.s32.totalorder %s457, 15
      %s461 = scalar_select %p460, %s457, 15
      %s462 = smul.addr %s461, 2
      %s463 = smul.addr %s459, 32
      %s464 = sadd.s32 %s462, %s463
      %s465 = smul.addr %s464, 8
      %s466 = scalar_lea.vmem %s0, %s465
      %p467 = pneg %p66
      %p468 = pneg %p63
      %s469 = smul.u32 8, %s28
      %p470 = scmp.lt.s32.totalorder %s27, 1
      %s471 = scalar_select %p470, %s27, 1
      %p472 = scmp.lt.s32.totalorder %s469, 15
      %s473 = scalar_select %p472, %s469, 15
      %s474 = smul.addr %s473, 2
      %s475 = smul.addr %s471, 32
      %s476 = sadd.s32 %s474, %s475
      %s477 = smul.addr %s476, 8
      %s478 = scalar_lea.vmem %s1, %s477
      %p479 = pneg %p94
      %p480 = pneg %p91
      %s481 = sadd.s32 %s28, 1
      %s482 = smul.u32 %s481, 8
      %p483 = scmp.lt.s32.totalorder %s482, 15
      %s484 = scalar_select %p483, %s482, 15
      %p485 = scmp.lt.s32.totalorder %s27, 1
      %s486 = scalar_select %p485, %s27, 1
      %p487 = scmp.lt.s32.totalorder %s484, 15
      %s488 = scalar_select %p487, %s484, 15
      %s489 = smul.addr %s488, 2
      %s490 = smul.addr %s486, 32
      %s491 = sadd.s32 %s489, %s490
      %s492 = smul.addr %s491, 8
      %s493 = scalar_lea.vmem %s2, %s492
      %p494 = pneg %p130
      %p495 = pneg %p127
      %p496 = pneg %p151
      %p497 = pneg %p148
      %p498 = pneg %p172
      %p499 = pneg %p169
      %p500 = pneg %p193
      %p501 = pneg %p190
      %p502 = pneg %p214
      %p503 = pneg %p211
      %p504 = pneg %p235
      %p505 = pneg %p232
      %p506 = pneg %p256
      %p507 = pneg %p253
      %p508 = pneg %p277
      %p509 = pneg %p274
      %p510 = pneg %p298
      %p511 = pneg %p295
      %p512 = pneg %p319
      %p513 = pneg %p316
      %p514 = pneg %p347
      %p515 = pneg %p344
      %s516 = smul.u32 8, %s28
      %p517 = scmp.lt.s32.totalorder %s27, 1
      %s518 = scalar_select %p517, %s27, 1
      %p519 = scmp.lt.s32.totalorder %s516, 15
      %s520 = scalar_select %p519, %s516, 15
      %s521 = smul.addr %s520, 2
      %s522 = smul.addr %s518, 32
      %s523 = sadd.s32 %s521, %s522
      %s524 = smul.addr %s523, 8
      %s525 = scalar_lea.vmem %s12, %s524
      %s526 = smul.u32 %s28, 8
      %s527 = ssub.s32 %s526, 1
      %p528 = scmp.gt.s32.totalorder %s527, 0
      %s529 = scalar_select %p528, %s527, 0
      %p530 = scmp.lt.s32.totalorder %s27, 1
      %s531 = scalar_select %p530, %s27, 1
      %p532 = scmp.lt.s32.totalorder %s529, 15
      %s533 = scalar_select %p532, %s529, 15
      %s534 = smul.addr %s533, 2
      %s535 = smul.addr %s531, 32
      %s536 = sadd.s32 %s534, %s535
      %s537 = smul.addr %s536, 8
      %s538 = scalar_lea.vmem %s0, %s537
      %s539 = smul.u32 %s28, 8
      %s540 = ssub.s32 %s539, 1
      %p541 = scmp.gt.s32.totalorder %s540, 0
      %s542 = scalar_select %p541, %s540, 0
      %s543 = smul.u32 8, %s28
      %p544 = scmp.lt.s32.totalorder %s27, 1
      %s545 = scalar_select %p544, %s27, 1
      %p546 = scmp.lt.s32.totalorder %s543, 15
      %s547 = scalar_select %p546, %s543, 15
      %s548 = smul.addr %s547, 2
      %s549 = smul.addr %s545, 32
      %s550 = sadd.s32 %s548, %s549
      %s551 = smul.addr %s550, 8
      %s552 = scalar_lea.vmem %s1, %s551
      %s553 = smul.u32 8, %s28
      %s554 = sadd.s32 %s28, 1
      %s555 = smul.u32 %s554, 8
      %p556 = scmp.lt.s32.totalorder %s555, 15
      %s557 = scalar_select %p556, %s555, 15
      %p558 = scmp.lt.s32.totalorder %s27, 1
      %s559 = scalar_select %p558, %s27, 1
      %p560 = scmp.lt.s32.totalorder %s557, 15
      %s561 = scalar_select %p560, %s557, 15
      %s562 = smul.addr %s561, 2
      %s563 = smul.addr %s559, 32
      %s564 = sadd.s32 %s562, %s563
      %s565 = smul.addr %s564, 8
      %s566 = scalar_lea.vmem %s2, %s565
      %s567 = sadd.s32 %s28, 1
      %s568 = smul.u32 %s567, 8
      %p569 = scmp.lt.s32.totalorder %s568, 15
      %s570 = scalar_select %p569, %s568, 15
      %s571 = smul.u32 8, %s28
      %p572 = scmp.lt.s32.totalorder %s27, 1
      %s573 = scalar_select %p572, %s27, 1
      %p574 = scmp.lt.s32.totalorder %s571, 15
      %s575 = scalar_select %p574, %s571, 15
      %s576 = smul.addr %s575, 2
      %s577 = smul.addr %s573, 32
      %s578 = sadd.s32 %s576, %s577
      %s579 = smul.addr %s578, 8
      %s580 = scalar_lea.vmem %s12, %s579
      %s581 = smul.u32 8, %s28
      %v583 = vld [vmem:[%s538] sm:$0xff]
      %v584 = vld [vmem:[%s538 + $0x8] sm:$0xff]
      %v585 = vld [vmem:[%s552] sm:$0xff]
      %v586 = vld [vmem:[%s552 + $0x8] sm:$0xff]
      %v587 = vld [vmem:[%s552 + $0x10] sm:$0xff]
      %v588 = vld [vmem:[%s552 + $0x18] sm:$0xff]
      %v589 = vld [vmem:[%s552 + $0x20] sm:$0xff]
      %v590 = vld [vmem:[%s552 + $0x28] sm:$0xff]
      %v591 = vld [vmem:[%s552 + $0x30] sm:$0xff]
      %v592 = vld [vmem:[%s552 + $0x38] sm:$0xff]
      %v593 = vld [vmem:[%s552 + $0x40] sm:$0xff]
      %v594 = vld [vmem:[%s552 + $0x48] sm:$0xff]
      %v595 = vld [vmem:[%s552 + $0x50] sm:$0xff]
      %v596 = vld [vmem:[%s552 + $0x58] sm:$0xff]
      %v597 = vld [vmem:[%s552 + $0x60] sm:$0xff]
      %v598 = vld [vmem:[%s552 + $0x68] sm:$0xff]
      %v599 = vld [vmem:[%s552 + $0x70] sm:$0xff]
      %v600 = vld [vmem:[%s552 + $0x78] sm:$0xff]
      %v601 = vld [vmem:[%s566] sm:$0xff]
      %v602 = vld [vmem:[%s566 + $0x8] sm:$0xff]
      %v603 = vpack.c.bf16 %v584, %v583
      %v604 = vpack.c.bf16 %v586, %v585
      %v605 = vpack.c.bf16 %v588, %v587
      %v606 = vpack.c.bf16 %v590, %v589
      %v607 = vpack.c.bf16 %v592, %v591
      %v608 = vpack.c.bf16 %v594, %v593
      %v609 = vpack.c.bf16 %v596, %v595
      %v610 = vpack.c.bf16 %v598, %v597
      %v611 = vpack.c.bf16 %v600, %v599
      %v612 = vpack.c.bf16 %v602, %v601
      %v613 = vld [vmem:[%s3] sm:$0xf]
      %v614 = vld [vmem:[%s3 + $0x4] sm:$0xf]
      %v615 = vld [vmem:[%s3 + $0x8] sm:$0xf]
      %v616 = vld [vmem:[%s3 + $0xc] sm:$0xf]
      %v617 = vld [vmem:[%s3 + $0x10] sm:$0xf]
      %v618 = vld [vmem:[%s3 + $0x14] sm:$0xf]
      %v619 = vld [vmem:[%s3 + $0x18] sm:$0xf]
      %v620 = vld [vmem:[%s3 + $0x1c] sm:$0xf]
      %v621 = vld [vmem:[%s3 + $0x20] sm:$0xf]
      %v622 = vld [vmem:[%s3 + $0x24] sm:$0xf]
      %v623 = vld [vmem:[%s3 + $0x28] sm:$0xf]
      %v624 = vld [vmem:[%s3 + $0x2c] sm:$0xf]
      %v625 = vld [vmem:[%s3 + $0x30] sm:$0xf]
      %v626 = vld [vmem:[%s3 + $0x34] sm:$0xf]
      %v627 = vld [vmem:[%s3 + $0x38] sm:$0xf]
      %v628 = vld [vmem:[%s3 + $0x3c] sm:$0xf]
      %v645 = vunpack.c.l.b16 %v613
      %v646 = vunpack.c.l.b16 %v614
      %v647 = vunpack.c.l.b16 %v615
      %v648 = vunpack.c.l.b16 %v616
      %v649 = vunpack.c.l.b16 %v617
      %v650 = vunpack.c.l.b16 %v618
      %v651 = vunpack.c.l.b16 %v619
      %v652 = vunpack.c.l.b16 %v620
      %v653 = vunpack.c.l.b16 %v621
      %v654 = vunpack.c.l.b16 %v622
      %v655 = vunpack.c.l.b16 %v623
      %v656 = vunpack.c.l.b16 %v624
      %v657 = vunpack.c.l.b16 %v625
      %v658 = vunpack.c.l.b16 %v626
      %v659 = vunpack.c.l.b16 %v627
      %v660 = vunpack.c.l.b16 %v628
      %v661 = vpack.c.b16 %v646, %v645
      %v662 = vpack.c.b16 %v648, %v647
      %v663 = vpack.c.b16 %v650, %v649
      %v664 = vpack.c.b16 %v652, %v651
      %v665 = vpack.c.b16 %v654, %v653
      %v666 = vpack.c.b16 %v656, %v655
      %v667 = vpack.c.b16 %v658, %v657
      %v668 = vpack.c.b16 %v660, %v659
      %677 = vmatprep.subr.bf16.mxu0 0
      %678 = vmatpush1.bf16.msra.mxu0 %v668
      %679 = vmatprep.subr.bf16.mxu0 0
      %680 = vmatpush1.bf16.msra.mxu0 %v667
      %681 = vmatprep.subr.bf16.mxu0 0
      %682 = vmatpush1.bf16.msra.mxu0 %v666
      %683 = vmatprep.subr.bf16.mxu0 0
      %684 = vmatpush1.bf16.msra.mxu0 %v665
      %685 = vmatprep.subr.bf16.mxu0 0
      %686 = vmatpush1.bf16.msra.mxu0 %v664
      %687 = vmatprep.subr.bf16.mxu0 0
      %688 = vmatpush1.bf16.msra.mxu0 %v663
      %689 = vmatprep.subr.bf16.mxu0 0
      %690 = vmatpush1.bf16.msra.mxu0 %v662
      %691 = vmatprep.subr.bf16.mxu0 0
      %692 = vmatpush1.bf16.msra.mxu0 %v661
      %693 = vmatprep.subr.bf16.mxu0 0
      %694 = vmatpush2.bf16.msra.mxu0 0
      %695 = vmatprep.subr.bf16.mxu0 0
      %696 = vmatpush2.bf16.msra.mxu0 0
      %697 = vmatprep.subr.bf16.mxu0 0
      %698 = vmatpush2.bf16.msra.mxu0 0
      %699 = vmatprep.subr.bf16.mxu0 0
      %700 = vmatpush2.bf16.msra.mxu0 0
      %701 = vmatprep.subr.bf16.mxu0 0
      %702 = vmatpush2.bf16.msra.mxu0 0
      %703 = vmatprep.subr.bf16.mxu0 0
      %704 = vmatpush2.bf16.msra.mxu0 0
      %705 = vmatprep.subr.bf16.mxu0 0
      %706 = vmatpush2.bf16.msra.mxu0 0
      %707 = vmatprep.subr.bf16.mxu0 0
      %708 = vmatpush2.bf16.msra.mxu0 0
      %709 = vmatprep.mubr.bf16.mxu0 0
      %710 = vmatmul.mubr.bf16.gmra.mxu0 %v603
      %v711 = vpop.f32.mrf.mxu0
      %v712 = vadd.f32 0.0, %v711
      %v713 = vpop.f32.mrf.mxu0
      %v714 = vpop.f32.mrf.mxu0
      %v715 = vadd.f32 0.0, %v714
      %v716 = vpop.f32.mrf.mxu0
      %717 = vmatprep.mubr.bf16.mxu0 0
      %718 = vmatmul.mubr.bf16.gmra.mxu0 %v604
      %v719 = vpop.f32.mrf.mxu0
      %v720 = vadd.f32 0.0, %v719
      %v721 = vpop.f32.mrf.mxu0
      %v722 = vpop.f32.mrf.mxu0
      %v723 = vadd.f32 0.0, %v722
      %v724 = vpop.f32.mrf.mxu0
      %725 = vmatprep.mubr.bf16.mxu0 0
      %726 = vmatmul.mubr.bf16.gmra.mxu0 %v605
      %v727 = vpop.f32.mrf.mxu0
      %v728 = vadd.f32 0.0, %v727
      %v729 = vpop.f32.mrf.mxu0
      %v730 = vpop.f32.mrf.mxu0
      %v731 = vadd.f32 0.0, %v730
      %v732 = vpop.f32.mrf.mxu0
      %733 = vmatprep.mubr.bf16.mxu0 0
      %734 = vmatmul.mubr.bf16.gmra.mxu0 %v606
      %v735 = vpop.f32.mrf.mxu0
      %v736 = vadd.f32 0.0, %v735
      %v737 = vpop.f32.mrf.mxu0
      %v738 = vpop.f32.mrf.mxu0
      %v739 = vadd.f32 0.0, %v738
      %v740 = vpop.f32.mrf.mxu0
      %741 = vmatprep.mubr.bf16.mxu0 0
      %742 = vmatmul.mubr.bf16.gmra.mxu0 %v607
      %v743 = vpop.f32.mrf.mxu0
      %v744 = vadd.f32 0.0, %v743
      %v745 = vpop.f32.mrf.mxu0
      %v746 = vpop.f32.mrf.mxu0
      %v747 = vadd.f32 0.0, %v746
      %v748 = vpop.f32.mrf.mxu0
      %749 = vmatprep.mubr.bf16.mxu0 0
      %750 = vmatmul.mubr.bf16.gmra.mxu0 %v608
      %v751 = vpop.f32.mrf.mxu0
      %v752 = vadd.f32 0.0, %v751
      %v753 = vpop.f32.mrf.mxu0
      %v754 = vpop.f32.mrf.mxu0
      %v755 = vadd.f32 0.0, %v754
      %v756 = vpop.f32.mrf.mxu0
      %757 = vmatprep.mubr.bf16.mxu0 0
      %758 = vmatmul.mubr.bf16.gmra.mxu0 %v609
      %v759 = vpop.f32.mrf.mxu0
      %v760 = vadd.f32 0.0, %v759
      %v761 = vpop.f32.mrf.mxu0
      %v762 = vpop.f32.mrf.mxu0
      %v763 = vadd.f32 0.0, %v762
      %v764 = vpop.f32.mrf.mxu0
      %765 = vmatprep.mubr.bf16.mxu0 0
      %766 = vmatmul.mubr.bf16.gmra.mxu0 %v610
      %v767 = vpop.f32.mrf.mxu0
      %v768 = vadd.f32 0.0, %v767
      %v769 = vpop.f32.mrf.mxu0
      %v770 = vpop.f32.mrf.mxu0
      %v771 = vadd.f32 0.0, %v770
      %v772 = vpop.f32.mrf.mxu0
      %773 = vmatprep.mubr.bf16.mxu0 0
      %774 = vmatmul.mubr.bf16.gmra.mxu0 %v611
      %v775 = vpop.f32.mrf.mxu0
      %v776 = vadd.f32 0.0, %v775
      %v777 = vpop.f32.mrf.mxu0
      %v778 = vpop.f32.mrf.mxu0
      %v779 = vadd.f32 0.0, %v778
      %v780 = vpop.f32.mrf.mxu0
      %781 = vmatprep.mubr.bf16.mxu0 0
      %782 = vmatmul.mubr.bf16.gmra.mxu0 %v612
      %v783 = vpop.f32.mrf.mxu0
      %v784 = vadd.f32 0.0, %v783
      %v785 = vpop.f32.mrf.mxu0
      %v786 = vpop.f32.mrf.mxu0
      %v787 = vadd.f32 0.0, %v786
      %v788 = vpop.f32.mrf.mxu0
      %789 = vdwg.mxu0
      %v790 = vld [vmem:[%s4] sm:$0x1]
      %v792 = vlaneseq
      %v793 = vshrl.u32 %v792, 7
      %v794 = vsub.s32 0, %v793
      %v795 = vrot.slane %v790, %v794
      %v797 = vmul.f32 %v712, %v795
      %v798 = vmul.f32 %v715, %v795
      %v799 = vmul.f32 %v720, %v795
      %v800 = vmul.f32 %v723, %v795
      %v801 = vmul.f32 %v728, %v795
      %v802 = vmul.f32 %v731, %v795
      %v803 = vmul.f32 %v736, %v795
      %v804 = vmul.f32 %v739, %v795
      %v805 = vmul.f32 %v744, %v795
      %v806 = vmul.f32 %v747, %v795
      %v807 = vmul.f32 %v752, %v795
      %v808 = vmul.f32 %v755, %v795
      %v809 = vmul.f32 %v760, %v795
      %v810 = vmul.f32 %v763, %v795
      %v811 = vmul.f32 %v768, %v795
      %v812 = vmul.f32 %v771, %v795
      %v813 = vmul.f32 %v776, %v795
      %v814 = vmul.f32 %v779, %v795
      %v815 = vmul.f32 %v784, %v795
      %v816 = vmul.f32 %v787, %v795
      %v817 = vld [vmem:[%s5] sm:$0x1]
      %v819 = vlaneseq
      %v820 = vshrl.u32 %v819, 7
      %v821 = vsub.s32 0, %v820
      %v822 = vrot.slane %v817, %v821
      %v824 = vadd.f32 %v797, %v822
      %v825 = vadd.f32 %v798, %v822
      %v826 = vadd.f32 %v799, %v822
      %v827 = vadd.f32 %v800, %v822
      %v828 = vadd.f32 %v801, %v822
      %v829 = vadd.f32 %v802, %v822
      %v830 = vadd.f32 %v803, %v822
      %v831 = vadd.f32 %v804, %v822
      %v832 = vadd.f32 %v805, %v822
      %v833 = vadd.f32 %v806, %v822
      %v834 = vadd.f32 %v807, %v822
      %v835 = vadd.f32 %v808, %v822
      %v836 = vadd.f32 %v809, %v822
      %v837 = vadd.f32 %v810, %v822
      %v838 = vadd.f32 %v811, %v822
      %v839 = vadd.f32 %v812, %v822
      %v840 = vadd.f32 %v813, %v822
      %v841 = vadd.f32 %v814, %v822
      %v842 = vadd.f32 %v815, %v822
      %v843 = vadd.f32 %v816, %v822
      %v844 = vmax.f32 %v824, 0.0
      %v845 = vmax.f32 %v825, 0.0
      %v846 = vmax.f32 %v826, 0.0
      %v847 = vmax.f32 %v827, 0.0
      %v848 = vmax.f32 %v828, 0.0
      %v849 = vmax.f32 %v829, 0.0
      %v850 = vmax.f32 %v830, 0.0
      %v851 = vmax.f32 %v831, 0.0
      %v852 = vmax.f32 %v832, 0.0
      %v853 = vmax.f32 %v833, 0.0
      %v854 = vmax.f32 %v834, 0.0
      %v855 = vmax.f32 %v835, 0.0
      %v856 = vmax.f32 %v836, 0.0
      %v857 = vmax.f32 %v837, 0.0
      %v858 = vmax.f32 %v838, 0.0
      %v859 = vmax.f32 %v839, 0.0
      %v860 = vmax.f32 %v840, 0.0
      %v861 = vmax.f32 %v841, 0.0
      %v862 = vmax.f32 %v842, 0.0
      %v863 = vmax.f32 %v843, 0.0
      %p864 = scmp.ne.s32.totalorder %s28, 0
      %s865 = scalar_select %p864, 1, 0
      %v866 = vstv %s865
      %vm867 = vcmp.eq.s32.totalorder %v866, 1
      %p868 = scmp.ne.s32.totalorder %s28, 1
      %s869 = scalar_select %p868, 1, 0
      %v870 = vstv %s869
      %vm871 = vcmp.eq.s32.totalorder %v870, 1
      %v872 = vsel %vm867, 1, 0
      %v873 = vsel %vm871, 1, 0
      %vm874 = vcmp.eq.s32.totalorder %v872, 1
      %vm875 = vcmp.eq.s32.totalorder %v873, 1
      %v876 = vsel %vm874, %v844, 0.0
      %v877 = vsel %vm874, %v845, 0.0
      %v878 = vsel 1, %v846, 0.0
      %v879 = vsel 1, %v847, 0.0
      %v880 = vsel 1, %v848, 0.0
      %v881 = vsel 1, %v849, 0.0
      %v882 = vsel 1, %v850, 0.0
      %v883 = vsel 1, %v851, 0.0
      %v884 = vsel 1, %v852, 0.0
      %v885 = vsel 1, %v853, 0.0
      %v886 = vsel 1, %v854, 0.0
      %v887 = vsel 1, %v855, 0.0
      %v888 = vsel 1, %v856, 0.0
      %v889 = vsel 1, %v857, 0.0
      %v890 = vsel 1, %v858, 0.0
      %v891 = vsel 1, %v859, 0.0
      %v892 = vsel 1, %v860, 0.0
      %v893 = vsel 1, %v861, 0.0
      %v894 = vsel %vm875, %v862, 0.0
      %v895 = vsel %vm875, %v863, 0.0
      %v896 = vpack.c.bf16 %v877, %v876
      %v897 = vpack.c.bf16 %v879, %v878
      %v898 = vpack.c.bf16 %v881, %v880
      %v899 = vpack.c.bf16 %v883, %v882
      %v900 = vpack.c.bf16 %v885, %v884
      %v901 = vpack.c.bf16 %v887, %v886
      %v902 = vpack.c.bf16 %v889, %v888
      %v903 = vpack.c.bf16 %v891, %v890
      %v904 = vpack.c.bf16 %v893, %v892
      %v905 = vpack.c.bf16 %v895, %v894
      %v907 = vshrl.u32 %v896, 16
      %v909 = vrot.slane %v907, 7
      %v910 = vshll.u32 %v896, 16
      %v912 = vor.u32 %v909, %v910
      %v914 = vshrl.u32 %v897, 16
      %v916 = vrot.slane %v914, 7
      %v917 = vshll.u32 %v897, 16
      %v919 = vor.u32 %v916, %v917
      %v921 = vshrl.u32 %v898, 16
      %v923 = vrot.slane %v921, 7
      %v924 = vshll.u32 %v898, 16
      %v926 = vor.u32 %v923, %v924
      %v928 = vshrl.u32 %v899, 16
      %v930 = vrot.slane %v928, 7
      %v931 = vshll.u32 %v899, 16
      %v933 = vor.u32 %v930, %v931
      %v935 = vshrl.u32 %v900, 16
      %v937 = vrot.slane %v935, 7
      %v938 = vshll.u32 %v900, 16
      %v940 = vor.u32 %v937, %v938
      %v942 = vshrl.u32 %v901, 16
      %v944 = vrot.slane %v942, 7
      %v945 = vshll.u32 %v901, 16
      %v947 = vor.u32 %v944, %v945
      %v949 = vshrl.u32 %v902, 16
      %v951 = vrot.slane %v949, 7
      %v952 = vshll.u32 %v902, 16
      %v954 = vor.u32 %v951, %v952
      %v956 = vshrl.u32 %v903, 16
      %v958 = vrot.slane %v956, 7
      %v959 = vshll.u32 %v903, 16
      %v961 = vor.u32 %v958, %v959
      %vm970 = vcmask 1040384
      %vm971 = vsmask.f32 256
      %vm972 = vmand %vm970, %vm971
      %v973 = vsel %vm972, 0, %v912
      %v974 = vsel %vm972, 0, %v919
      %v975 = vsel %vm972, 0, %v926
      %v976 = vsel %vm972, 0, %v933
      %v977 = vsel %vm972, 0, %v940
      %v978 = vsel %vm972, 0, %v947
      %v979 = vsel %vm972, 0, %v954
      %v980 = vsel %vm972, 0, %v961
      %v981 = vrot.slane %v910, 1
      %v982 = vor.u32 %v907, %v981
      %v983 = vrot.slane %v917, 1
      %v984 = vor.u32 %v914, %v983
      %v985 = vrot.slane %v924, 1
      %v986 = vor.u32 %v921, %v985
      %v987 = vrot.slane %v931, 1
      %v988 = vor.u32 %v928, %v987
      %v989 = vrot.slane %v938, 1
      %v990 = vor.u32 %v935, %v989
      %v991 = vrot.slane %v945, 1
      %v992 = vor.u32 %v942, %v991
      %v993 = vrot.slane %v952, 1
      %v994 = vor.u32 %v949, %v993
      %v995 = vrot.slane %v959, 1
      %v996 = vor.u32 %v956, %v995
      %vm1005 = vcmask 1047552
      %vm1006 = vsmask.f32 7424
      %vm1007 = vmand %vm1005, %vm1006
      %v1008 = vsel %vm1007, %v982, 0
      %v1009 = vsel %vm1007, %v984, 0
      %v1010 = vsel %vm1007, %v986, 0
      %v1011 = vsel %vm1007, %v988, 0
      %v1012 = vsel %vm1007, %v990, 0
      %v1013 = vsel %vm1007, %v992, 0
      %v1014 = vsel %vm1007, %v994, 0
      %v1015 = vsel %vm1007, %v996, 0
      %v1016 = vld [vmem:[%s6] sm:$0xf]
      %v1017 = vld [vmem:[%s6 + $0x4] sm:$0xf]
      %v1018 = vld [vmem:[%s6 + $0x8] sm:$0xf]
      %v1019 = vld [vmem:[%s6 + $0xc] sm:$0xf]
      %v1020 = vld [vmem:[%s6 + $0x10] sm:$0xf]
      %v1021 = vld [vmem:[%s6 + $0x14] sm:$0xf]
      %v1022 = vld [vmem:[%s6 + $0x18] sm:$0xf]
      %v1023 = vld [vmem:[%s6 + $0x1c] sm:$0xf]
      %v1024 = vld [vmem:[%s6 + $0x20] sm:$0xf]
      %v1025 = vld [vmem:[%s6 + $0x24] sm:$0xf]
      %v1026 = vld [vmem:[%s6 + $0x28] sm:$0xf]
      %v1027 = vld [vmem:[%s6 + $0x2c] sm:$0xf]
      %v1028 = vld [vmem:[%s6 + $0x30] sm:$0xf]
      %v1029 = vld [vmem:[%s6 + $0x34] sm:$0xf]
      %v1030 = vld [vmem:[%s6 + $0x38] sm:$0xf]
      %v1031 = vld [vmem:[%s6 + $0x3c] sm:$0xf]
      %v1032 = vld [vmem:[%s6 + $0x40] sm:$0xf]
      %v1033 = vld [vmem:[%s6 + $0x44] sm:$0xf]
      %v1034 = vld [vmem:[%s6 + $0x48] sm:$0xf]
      %v1035 = vld [vmem:[%s6 + $0x4c] sm:$0xf]
      %v1036 = vld [vmem:[%s6 + $0x50] sm:$0xf]
      %v1037 = vld [vmem:[%s6 + $0x54] sm:$0xf]
      %v1038 = vld [vmem:[%s6 + $0x58] sm:$0xf]
      %v1039 = vld [vmem:[%s6 + $0x5c] sm:$0xf]
      %v1040 = vld [vmem:[%s6 + $0x60] sm:$0xf]
      %v1041 = vld [vmem:[%s6 + $0x64] sm:$0xf]
      %v1042 = vld [vmem:[%s6 + $0x68] sm:$0xf]
      %v1043 = vld [vmem:[%s6 + $0x6c] sm:$0xf]
      %v1044 = vld [vmem:[%s6 + $0x70] sm:$0xf]
      %v1045 = vld [vmem:[%s6 + $0x74] sm:$0xf]
      %v1046 = vld [vmem:[%s6 + $0x78] sm:$0xf]
      %v1047 = vld [vmem:[%s6 + $0x7c] sm:$0xf]
      %v1048 = vld [vmem:[%s6 + $0x80] sm:$0xf]
      %v1049 = vld [vmem:[%s6 + $0x84] sm:$0xf]
      %v1050 = vld [vmem:[%s6 + $0x88] sm:$0xf]
      %v1051 = vld [vmem:[%s6 + $0x8c] sm:$0xf]
      %v1052 = vld [vmem:[%s6 + $0x90] sm:$0xf]
      %v1053 = vld [vmem:[%s6 + $0x94] sm:$0xf]
      %v1054 = vld [vmem:[%s6 + $0x98] sm:$0xf]
      %v1055 = vld [vmem:[%s6 + $0x9c] sm:$0xf]
      %v1056 = vld [vmem:[%s6 + $0xa0] sm:$0xf]
      %v1057 = vld [vmem:[%s6 + $0xa4] sm:$0xf]
      %v1058 = vld [vmem:[%s6 + $0xa8] sm:$0xf]
      %v1059 = vld [vmem:[%s6 + $0xac] sm:$0xf]
      %v1060 = vld [vmem:[%s6 + $0xb0] sm:$0xf]
      %v1061 = vld [vmem:[%s6 + $0xb4] sm:$0xf]
      %v1062 = vld [vmem:[%s6 + $0xb8] sm:$0xf]
      %v1063 = vld [vmem:[%s6 + $0xbc] sm:$0xf]
      %v1065 = vshrl.u32 %v904, 16
      %v1067 = vrot.slane %v1065, 7
      %v1068 = vshll.u32 %v904, 16
      %v1070 = vor.u32 %v1067, %v1068
      %v1072 = vsel %vm972, 0, %v1070
      %v1073 = vrot.slane %v1068, 1
      %v1074 = vor.u32 %v1065, %v1073
      %v1076 = vsel %vm1007, %v1074, 0
      %s1077 = scalar_lea.vmem %s6, 192
      %v1078 = vld [vmem:[%s1077] sm:$0xf]
      %v1079 = vld [vmem:[%s1077 + $0x4] sm:$0xf]
      %v1080 = vld [vmem:[%s1077 + $0x8] sm:$0xf]
      %v1081 = vld [vmem:[%s1077 + $0xc] sm:$0xf]
      %v1082 = vld [vmem:[%s1077 + $0x10] sm:$0xf]
      %v1083 = vld [vmem:[%s1077 + $0x14] sm:$0xf]
      %v1084 = vld [vmem:[%s1077 + $0x18] sm:$0xf]
      %v1085 = vld [vmem:[%s1077 + $0x1c] sm:$0xf]
      %v1086 = vld [vmem:[%s1077 + $0x20] sm:$0xf]
      %v1087 = vld [vmem:[%s1077 + $0x24] sm:$0xf]
      %v1088 = vld [vmem:[%s1077 + $0x28] sm:$0xf]
      %v1089 = vld [vmem:[%s1077 + $0x2c] sm:$0xf]
      %v1090 = vld [vmem:[%s1077 + $0x30] sm:$0xf]
      %v1091 = vld [vmem:[%s1077 + $0x34] sm:$0xf]
      %v1092 = vld [vmem:[%s1077 + $0x38] sm:$0xf]
      %v1093 = vld [vmem:[%s1077 + $0x3c] sm:$0xf]
      %v1094 = vld [vmem:[%s1077 + $0x40] sm:$0xf]
      %v1095 = vld [vmem:[%s1077 + $0x44] sm:$0xf]
      %v1096 = vld [vmem:[%s1077 + $0x48] sm:$0xf]
      %v1097 = vld [vmem:[%s1077 + $0x4c] sm:$0xf]
      %v1098 = vld [vmem:[%s1077 + $0x50] sm:$0xf]
      %v1099 = vld [vmem:[%s1077 + $0x54] sm:$0xf]
      %v1100 = vld [vmem:[%s1077 + $0x58] sm:$0xf]
      %v1101 = vld [vmem:[%s1077 + $0x5c] sm:$0xf]
      %v1102 = vld [vmem:[%s1077 + $0x60] sm:$0xf]
      %v1103 = vld [vmem:[%s1077 + $0x64] sm:$0xf]
      %v1104 = vld [vmem:[%s1077 + $0x68] sm:$0xf]
      %v1105 = vld [vmem:[%s1077 + $0x6c] sm:$0xf]
      %v1106 = vld [vmem:[%s1077 + $0x70] sm:$0xf]
      %v1107 = vld [vmem:[%s1077 + $0x74] sm:$0xf]
      %v1108 = vld [vmem:[%s1077 + $0x78] sm:$0xf]
      %v1109 = vld [vmem:[%s1077 + $0x7c] sm:$0xf]
      %v1110 = vld [vmem:[%s1077 + $0x80] sm:$0xf]
      %v1111 = vld [vmem:[%s1077 + $0x84] sm:$0xf]
      %v1112 = vld [vmem:[%s1077 + $0x88] sm:$0xf]
      %v1113 = vld [vmem:[%s1077 + $0x8c] sm:$0xf]
      %v1114 = vld [vmem:[%s1077 + $0x90] sm:$0xf]
      %v1115 = vld [vmem:[%s1077 + $0x94] sm:$0xf]
      %v1116 = vld [vmem:[%s1077 + $0x98] sm:$0xf]
      %v1117 = vld [vmem:[%s1077 + $0x9c] sm:$0xf]
      %v1118 = vld [vmem:[%s1077 + $0xa0] sm:$0xf]
      %v1119 = vld [vmem:[%s1077 + $0xa4] sm:$0xf]
      %v1120 = vld [vmem:[%s1077 + $0xa8] sm:$0xf]
      %v1121 = vld [vmem:[%s1077 + $0xac] sm:$0xf]
      %v1122 = vld [vmem:[%s1077 + $0xb0] sm:$0xf]
      %v1123 = vld [vmem:[%s1077 + $0xb4] sm:$0xf]
      %v1124 = vld [vmem:[%s1077 + $0xb8] sm:$0xf]
      %v1125 = vld [vmem:[%s1077 + $0xbc] sm:$0xf]
      %v1174 = vunpack.c.l.b16 %v1078
      %v1175 = vunpack.c.l.b16 %v1079
      %v1176 = vunpack.c.l.b16 %v1080
      %v1177 = vunpack.c.l.b16 %v1081
      %v1178 = vunpack.c.l.b16 %v1082
      %v1179 = vunpack.c.l.b16 %v1083
      %v1180 = vunpack.c.l.b16 %v1084
      %v1181 = vunpack.c.l.b16 %v1085
      %v1182 = vunpack.c.l.b16 %v1086
      %v1183 = vunpack.c.l.b16 %v1087
      %v1184 = vunpack.c.l.b16 %v1088
      %v1185 = vunpack.c.l.b16 %v1089
      %v1186 = vunpack.c.l.b16 %v1090
      %v1187 = vunpack.c.l.b16 %v1091
      %v1188 = vunpack.c.l.b16 %v1092
      %v1189 = vunpack.c.l.b16 %v1093
      %v1190 = vunpack.c.l.b16 %v1094
      %v1191 = vunpack.c.l.b16 %v1095
      %v1192 = vunpack.c.l.b16 %v1096
      %v1193 = vunpack.c.l.b16 %v1097
      %v1194 = vunpack.c.l.b16 %v1098
      %v1195 = vunpack.c.l.b16 %v1099
      %v1196 = vunpack.c.l.b16 %v1100
      %v1197 = vunpack.c.l.b16 %v1101
      %v1198 = vunpack.c.l.b16 %v1102
      %v1199 = vunpack.c.l.b16 %v1103
      %v1200 = vunpack.c.l.b16 %v1104
      %v1201 = vunpack.c.l.b16 %v1105
      %v1202 = vunpack.c.l.b16 %v1106
      %v1203 = vunpack.c.l.b16 %v1107
      %v1204 = vunpack.c.l.b16 %v1108
      %v1205 = vunpack.c.l.b16 %v1109
      %v1206 = vunpack.c.l.b16 %v1110
      %v1207 = vunpack.c.l.b16 %v1111
      %v1208 = vunpack.c.l.b16 %v1112
      %v1209 = vunpack.c.l.b16 %v1113
      %v1210 = vunpack.c.l.b16 %v1114
      %v1211 = vunpack.c.l.b16 %v1115
      %v1212 = vunpack.c.l.b16 %v1116
      %v1213 = vunpack.c.l.b16 %v1117
      %v1214 = vunpack.c.l.b16 %v1118
      %v1215 = vunpack.c.l.b16 %v1119
      %v1216 = vunpack.c.l.b16 %v1120
      %v1217 = vunpack.c.l.b16 %v1121
      %v1218 = vunpack.c.l.b16 %v1122
      %v1219 = vunpack.c.l.b16 %v1123
      %v1220 = vunpack.c.l.b16 %v1124
      %v1221 = vunpack.c.l.b16 %v1125
      %v1222 = vpack.c.b16 %v1175, %v1174
      %v1223 = vpack.c.b16 %v1177, %v1176
      %v1224 = vpack.c.b16 %v1179, %v1178
      %v1225 = vpack.c.b16 %v1181, %v1180
      %v1226 = vpack.c.b16 %v1183, %v1182
      %v1227 = vpack.c.b16 %v1185, %v1184
      %v1228 = vpack.c.b16 %v1187, %v1186
      %v1229 = vpack.c.b16 %v1189, %v1188
      %v1230 = vpack.c.b16 %v1191, %v1190
      %v1231 = vpack.c.b16 %v1193, %v1192
      %v1232 = vpack.c.b16 %v1195, %v1194
      %v1233 = vpack.c.b16 %v1197, %v1196
      %v1234 = vpack.c.b16 %v1199, %v1198
      %v1235 = vpack.c.b16 %v1201, %v1200
      %v1236 = vpack.c.b16 %v1203, %v1202
      %v1237 = vpack.c.b16 %v1205, %v1204
      %v1238 = vpack.c.b16 %v1207, %v1206
      %v1239 = vpack.c.b16 %v1209, %v1208
      %v1240 = vpack.c.b16 %v1211, %v1210
      %v1241 = vpack.c.b16 %v1213, %v1212
      %v1242 = vpack.c.b16 %v1215, %v1214
      %v1243 = vpack.c.b16 %v1217, %v1216
      %v1244 = vpack.c.b16 %v1219, %v1218
      %v1245 = vpack.c.b16 %v1221, %v1220
      %1270 = vmatprep.subr.bf16.mxu0 0
      %1271 = vmatpush1.bf16.msra.mxu0 %v1229
      %1272 = vmatprep.subr.bf16.mxu0 0
      %1273 = vmatpush1.bf16.msra.mxu0 %v1228
      %1274 = vmatprep.subr.bf16.mxu0 0
      %1275 = vmatpush1.bf16.msra.mxu0 %v1227
      %1276 = vmatprep.subr.bf16.mxu0 0
      %1277 = vmatpush1.bf16.msra.mxu0 %v1226
      %1278 = vmatprep.subr.bf16.mxu0 0
      %1279 = vmatpush1.bf16.msra.mxu0 %v1225
      %1280 = vmatprep.subr.bf16.mxu0 0
      %1281 = vmatpush1.bf16.msra.mxu0 %v1224
      %1282 = vmatprep.subr.bf16.mxu0 0
      %1283 = vmatpush1.bf16.msra.mxu0 %v1223
      %1284 = vmatprep.subr.bf16.mxu0 0
      %1285 = vmatpush1.bf16.msra.mxu0 %v1222
      %1286 = vmatprep.subr.bf16.mxu0 0
      %1287 = vmatpush2.bf16.msra.mxu0 %v1237
      %1288 = vmatprep.subr.bf16.mxu0 0
      %1289 = vmatpush2.bf16.msra.mxu0 %v1236
      %1290 = vmatprep.subr.bf16.mxu0 0
      %1291 = vmatpush2.bf16.msra.mxu0 %v1235
      %1292 = vmatprep.subr.bf16.mxu0 0
      %1293 = vmatpush2.bf16.msra.mxu0 %v1234
      %1294 = vmatprep.subr.bf16.mxu0 0
      %1295 = vmatpush2.bf16.msra.mxu0 %v1233
      %1296 = vmatprep.subr.bf16.mxu0 0
      %1297 = vmatpush2.bf16.msra.mxu0 %v1232
      %1298 = vmatprep.subr.bf16.mxu0 0
      %1299 = vmatpush2.bf16.msra.mxu0 %v1231
      %1300 = vmatprep.subr.bf16.mxu0 0
      %1301 = vmatpush2.bf16.msra.mxu0 %v1230
      %1302 = vmatprep.mubr.bf16.mxu0 %v897
      %1303 = vmatmul.mubr.bf16.gmra.mxu0 %v974
      %v1304 = vpop.f32.mrf.mxu0
      %v1305 = vadd.f32 0.0, %v1304
      %v1306 = vpop.f32.mrf.mxu0
      %v1307 = vpop.f32.mrf.mxu0
      %v1308 = vadd.f32 0.0, %v1307
      %v1309 = vpop.f32.mrf.mxu0
      %1310 = vmatprep.mubr.bf16.mxu0 %v898
      %1311 = vmatmul.mubr.bf16.gmra.mxu0 %v975
      %v1312 = vpop.f32.mrf.mxu0
      %v1313 = vadd.f32 0.0, %v1312
      %v1314 = vpop.f32.mrf.mxu0
      %v1315 = vpop.f32.mrf.mxu0
      %v1316 = vadd.f32 0.0, %v1315
      %v1317 = vpop.f32.mrf.mxu0
      %1318 = vmatprep.mubr.bf16.mxu0 %v899
      %1319 = vmatmul.mubr.bf16.gmra.mxu0 %v976
      %v1320 = vpop.f32.mrf.mxu0
      %v1321 = vadd.f32 0.0, %v1320
      %v1322 = vpop.f32.mrf.mxu0
      %v1323 = vpop.f32.mrf.mxu0
      %v1324 = vadd.f32 0.0, %v1323
      %v1325 = vpop.f32.mrf.mxu0
      %1326 = vmatprep.mubr.bf16.mxu0 %v900
      %1327 = vmatmul.mubr.bf16.gmra.mxu0 %v977
      %v1328 = vpop.f32.mrf.mxu0
      %v1329 = vadd.f32 0.0, %v1328
      %v1330 = vpop.f32.mrf.mxu0
      %v1331 = vpop.f32.mrf.mxu0
      %v1332 = vadd.f32 0.0, %v1331
      %v1333 = vpop.f32.mrf.mxu0
      %1334 = vmatprep.mubr.bf16.mxu0 %v901
      %1335 = vmatmul.mubr.bf16.gmra.mxu0 %v978
      %v1336 = vpop.f32.mrf.mxu0
      %v1337 = vadd.f32 0.0, %v1336
      %v1338 = vpop.f32.mrf.mxu0
      %v1339 = vpop.f32.mrf.mxu0
      %v1340 = vadd.f32 0.0, %v1339
      %v1341 = vpop.f32.mrf.mxu0
      %1342 = vmatprep.mubr.bf16.mxu0 %v902
      %1343 = vmatmul.mubr.bf16.gmra.mxu0 %v979
      %v1344 = vpop.f32.mrf.mxu0
      %v1345 = vadd.f32 0.0, %v1344
      %v1346 = vpop.f32.mrf.mxu0
      %v1347 = vpop.f32.mrf.mxu0
      %v1348 = vadd.f32 0.0, %v1347
      %v1349 = vpop.f32.mrf.mxu0
      %1350 = vmatprep.mubr.bf16.mxu0 %v903
      %1351 = vmatmul.mubr.bf16.gmra.mxu0 %v980
      %v1352 = vpop.f32.mrf.mxu0
      %v1353 = vadd.f32 0.0, %v1352
      %v1354 = vpop.f32.mrf.mxu0
      %v1355 = vpop.f32.mrf.mxu0
      %v1356 = vadd.f32 0.0, %v1355
      %v1357 = vpop.f32.mrf.mxu0
      %1358 = vmatprep.mubr.bf16.mxu0 %v904
      %1359 = vmatmul.mubr.bf16.gmra.mxu0 %v1072
      %v1360 = vpop.f32.mrf.mxu0
      %v1361 = vadd.f32 0.0, %v1360
      %v1362 = vpop.f32.mrf.mxu0
      %v1363 = vpop.f32.mrf.mxu0
      %v1364 = vadd.f32 0.0, %v1363
      %v1365 = vpop.f32.mrf.mxu0
      %1366 = vdwg.mxu0
      %1367 = vmatprep.subr.bf16.mxu0 0
      %1368 = vmatpush1.bf16.msra.mxu0 %v1245
      %1369 = vmatprep.subr.bf16.mxu0 0
      %1370 = vmatpush1.bf16.msra.mxu0 %v1244
      %1371 = vmatprep.subr.bf16.mxu0 0
      %1372 = vmatpush1.bf16.msra.mxu0 %v1243
      %1373 = vmatprep.subr.bf16.mxu0 0
      %1374 = vmatpush1.bf16.msra.mxu0 %v1242
      %1375 = vmatprep.subr.bf16.mxu0 0
      %1376 = vmatpush1.bf16.msra.mxu0 %v1241
      %1377 = vmatprep.subr.bf16.mxu0 0
      %1378 = vmatpush1.bf16.msra.mxu0 %v1240
      %1379 = vmatprep.subr.bf16.mxu0 0
      %1380 = vmatpush1.bf16.msra.mxu0 %v1239
      %1381 = vmatprep.subr.bf16.mxu0 0
      %1382 = vmatpush1.bf16.msra.mxu0 %v1238
      %1383 = vmatprep.subr.bf16.mxu0 0
      %1384 = vmatpush2.bf16.msra.mxu0 0
      %1385 = vmatprep.subr.bf16.mxu0 0
      %1386 = vmatpush2.bf16.msra.mxu0 0
      %1387 = vmatprep.subr.bf16.mxu0 0
      %1388 = vmatpush2.bf16.msra.mxu0 0
      %1389 = vmatprep.subr.bf16.mxu0 0
      %1390 = vmatpush2.bf16.msra.mxu0 0
      %1391 = vmatprep.subr.bf16.mxu0 0
      %1392 = vmatpush2.bf16.msra.mxu0 0
      %1393 = vmatprep.subr.bf16.mxu0 0
      %1394 = vmatpush2.bf16.msra.mxu0 0
      %1395 = vmatprep.subr.bf16.mxu0 0
      %1396 = vmatpush2.bf16.msra.mxu0 0
      %1397 = vmatprep.subr.bf16.mxu0 0
      %1398 = vmatpush2.bf16.msra.mxu0 0
      %1399 = vmatprep.mubr.bf16.mxu0 0
      %1400 = vmatmul.mubr.bf16.gmra.mxu0 %v1009
      %v1401 = vpop.f32.mrf.mxu0
      %v1402 = vadd.f32 %v1305, %v1401
      %v1403 = vpop.f32.mrf.mxu0
      %v1404 = vpop.f32.mrf.mxu0
      %v1405 = vadd.f32 %v1308, %v1404
      %v1406 = vpop.f32.mrf.mxu0
      %1407 = vmatprep.mubr.bf16.mxu0 0
      %1408 = vmatmul.mubr.bf16.gmra.mxu0 %v1010
      %v1409 = vpop.f32.mrf.mxu0
      %v1410 = vadd.f32 %v1313, %v1409
      %v1411 = vpop.f32.mrf.mxu0
      %v1412 = vpop.f32.mrf.mxu0
      %v1413 = vadd.f32 %v1316, %v1412
      %v1414 = vpop.f32.mrf.mxu0
      %1415 = vmatprep.mubr.bf16.mxu0 0
      %1416 = vmatmul.mubr.bf16.gmra.mxu0 %v1011
      %v1417 = vpop.f32.mrf.mxu0
      %v1418 = vadd.f32 %v1321, %v1417
      %v1419 = vpop.f32.mrf.mxu0
      %v1420 = vpop.f32.mrf.mxu0
      %v1421 = vadd.f32 %v1324, %v1420
      %v1422 = vpop.f32.mrf.mxu0
      %1423 = vmatprep.mubr.bf16.mxu0 0
      %1424 = vmatmul.mubr.bf16.gmra.mxu0 %v1012
      %v1425 = vpop.f32.mrf.mxu0
      %v1426 = vadd.f32 %v1329, %v1425
      %v1427 = vpop.f32.mrf.mxu0
      %v1428 = vpop.f32.mrf.mxu0
      %v1429 = vadd.f32 %v1332, %v1428
      %v1430 = vpop.f32.mrf.mxu0
      %1431 = vmatprep.mubr.bf16.mxu0 0
      %1432 = vmatmul.mubr.bf16.gmra.mxu0 %v1013
      %v1433 = vpop.f32.mrf.mxu0
      %v1434 = vadd.f32 %v1337, %v1433
      %v1435 = vpop.f32.mrf.mxu0
      %v1436 = vpop.f32.mrf.mxu0
      %v1437 = vadd.f32 %v1340, %v1436
      %v1438 = vpop.f32.mrf.mxu0
      %1439 = vmatprep.mubr.bf16.mxu0 0
      %1440 = vmatmul.mubr.bf16.gmra.mxu0 %v1014
      %v1441 = vpop.f32.mrf.mxu0
      %v1442 = vadd.f32 %v1345, %v1441
      %v1443 = vpop.f32.mrf.mxu0
      %v1444 = vpop.f32.mrf.mxu0
      %v1445 = vadd.f32 %v1348, %v1444
      %v1446 = vpop.f32.mrf.mxu0
      %1447 = vmatprep.mubr.bf16.mxu0 0
      %1448 = vmatmul.mubr.bf16.gmra.mxu0 %v1015
      %v1449 = vpop.f32.mrf.mxu0
      %v1450 = vadd.f32 %v1353, %v1449
      %v1451 = vpop.f32.mrf.mxu0
      %v1452 = vpop.f32.mrf.mxu0
      %v1453 = vadd.f32 %v1356, %v1452
      %v1454 = vpop.f32.mrf.mxu0
      %1455 = vmatprep.mubr.bf16.mxu0 0
      %1456 = vmatmul.mubr.bf16.gmra.mxu0 %v1076
      %v1457 = vpop.f32.mrf.mxu0
      %v1458 = vadd.f32 %v1361, %v1457
      %v1459 = vpop.f32.mrf.mxu0
      %v1460 = vpop.f32.mrf.mxu0
      %v1461 = vadd.f32 %v1364, %v1460
      %v1462 = vpop.f32.mrf.mxu0
      %1463 = vdwg.mxu0
      %v1512 = vunpack.c.l.b16 %v1016
      %v1513 = vunpack.c.l.b16 %v1017
      %v1514 = vunpack.c.l.b16 %v1018
      %v1515 = vunpack.c.l.b16 %v1019
      %v1516 = vunpack.c.l.b16 %v1020
      %v1517 = vunpack.c.l.b16 %v1021
      %v1518 = vunpack.c.l.b16 %v1022
      %v1519 = vunpack.c.l.b16 %v1023
      %v1520 = vunpack.c.l.b16 %v1024
      %v1521 = vunpack.c.l.b16 %v1025
      %v1522 = vunpack.c.l.b16 %v1026
      %v1523 = vunpack.c.l.b16 %v1027
      %v1524 = vunpack.c.l.b16 %v1028
      %v1525 = vunpack.c.l.b16 %v1029
      %v1526 = vunpack.c.l.b16 %v1030
      %v1527 = vunpack.c.l.b16 %v1031
      %v1528 = vunpack.c.l.b16 %v1032
      %v1529 = vunpack.c.l.b16 %v1033
      %v1530 = vunpack.c.l.b16 %v1034
      %v1531 = vunpack.c.l.b16 %v1035
      %v1532 = vunpack.c.l.b16 %v1036
      %v1533 = vunpack.c.l.b16 %v1037
      %v1534 = vunpack.c.l.b16 %v1038
      %v1535 = vunpack.c.l.b16 %v1039
      %v1536 = vunpack.c.l.b16 %v1040
      %v1537 = vunpack.c.l.b16 %v1041
      %v1538 = vunpack.c.l.b16 %v1042
      %v1539 = vunpack.c.l.b16 %v1043
      %v1540 = vunpack.c.l.b16 %v1044
      %v1541 = vunpack.c.l.b16 %v1045
      %v1542 = vunpack.c.l.b16 %v1046
      %v1543 = vunpack.c.l.b16 %v1047
      %v1544 = vunpack.c.l.b16 %v1048
      %v1545 = vunpack.c.l.b16 %v1049
      %v1546 = vunpack.c.l.b16 %v1050
      %v1547 = vunpack.c.l.b16 %v1051
      %v1548 = vunpack.c.l.b16 %v1052
      %v1549 = vunpack.c.l.b16 %v1053
      %v1550 = vunpack.c.l.b16 %v1054
      %v1551 = vunpack.c.l.b16 %v1055
      %v1552 = vunpack.c.l.b16 %v1056
      %v1553 = vunpack.c.l.b16 %v1057
      %v1554 = vunpack.c.l.b16 %v1058
      %v1555 = vunpack.c.l.b16 %v1059
      %v1556 = vunpack.c.l.b16 %v1060
      %v1557 = vunpack.c.l.b16 %v1061
      %v1558 = vunpack.c.l.b16 %v1062
      %v1559 = vunpack.c.l.b16 %v1063
      %v1560 = vpack.c.b16 %v1513, %v1512
      %v1561 = vpack.c.b16 %v1515, %v1514
      %v1562 = vpack.c.b16 %v1517, %v1516
      %v1563 = vpack.c.b16 %v1519, %v1518
      %v1564 = vpack.c.b16 %v1521, %v1520
      %v1565 = vpack.c.b16 %v1523, %v1522
      %v1566 = vpack.c.b16 %v1525, %v1524
      %v1567 = vpack.c.b16 %v1527, %v1526
      %v1568 = vpack.c.b16 %v1529, %v1528
      %v1569 = vpack.c.b16 %v1531, %v1530
      %v1570 = vpack.c.b16 %v1533, %v1532
      %v1571 = vpack.c.b16 %v1535, %v1534
      %v1572 = vpack.c.b16 %v1537, %v1536
      %v1573 = vpack.c.b16 %v1539, %v1538
      %v1574 = vpack.c.b16 %v1541, %v1540
      %v1575 = vpack.c.b16 %v1543, %v1542
      %v1576 = vpack.c.b16 %v1545, %v1544
      %v1577 = vpack.c.b16 %v1547, %v1546
      %v1578 = vpack.c.b16 %v1549, %v1548
      %v1579 = vpack.c.b16 %v1551, %v1550
      %v1580 = vpack.c.b16 %v1553, %v1552
      %v1581 = vpack.c.b16 %v1555, %v1554
      %v1582 = vpack.c.b16 %v1557, %v1556
      %v1583 = vpack.c.b16 %v1559, %v1558
      %1608 = vmatprep.subr.bf16.mxu0 0
      %1609 = vmatpush1.bf16.msra.mxu0 %v1567
      %1610 = vmatprep.subr.bf16.mxu0 0
      %1611 = vmatpush1.bf16.msra.mxu0 %v1566
      %1612 = vmatprep.subr.bf16.mxu0 0
      %1613 = vmatpush1.bf16.msra.mxu0 %v1565
      %1614 = vmatprep.subr.bf16.mxu0 0
      %1615 = vmatpush1.bf16.msra.mxu0 %v1564
      %1616 = vmatprep.subr.bf16.mxu0 0
      %1617 = vmatpush1.bf16.msra.mxu0 %v1563
      %1618 = vmatprep.subr.bf16.mxu0 0
      %1619 = vmatpush1.bf16.msra.mxu0 %v1562
      %1620 = vmatprep.subr.bf16.mxu0 0
      %1621 = vmatpush1.bf16.msra.mxu0 %v1561
      %1622 = vmatprep.subr.bf16.mxu0 0
      %1623 = vmatpush1.bf16.msra.mxu0 %v1560
      %1624 = vmatprep.subr.bf16.mxu0 0
      %1625 = vmatpush2.bf16.msra.mxu0 %v1575
      %1626 = vmatprep.subr.bf16.mxu0 0
      %1627 = vmatpush2.bf16.msra.mxu0 %v1574
      %1628 = vmatprep.subr.bf16.mxu0 0
      %1629 = vmatpush2.bf16.msra.mxu0 %v1573
      %1630 = vmatprep.subr.bf16.mxu0 0
      %1631 = vmatpush2.bf16.msra.mxu0 %v1572
      %1632 = vmatprep.subr.bf16.mxu0 0
      %1633 = vmatpush2.bf16.msra.mxu0 %v1571
      %1634 = vmatprep.subr.bf16.mxu0 0
      %1635 = vmatpush2.bf16.msra.mxu0 %v1570
      %1636 = vmatprep.subr.bf16.mxu0 0
      %1637 = vmatpush2.bf16.msra.mxu0 %v1569
      %1638 = vmatprep.subr.bf16.mxu0 0
      %1639 = vmatpush2.bf16.msra.mxu0 %v1568
      %1640 = vmatprep.mubr.bf16.mxu0 %v896
      %1641 = vmatmul.mubr.bf16.gmra.mxu0 %v973
      %v1642 = vpop.f32.mrf.mxu0
      %v1643 = vadd.f32 %v1402, %v1642
      %v1644 = vpop.f32.mrf.mxu0
      %v1645 = vpop.f32.mrf.mxu0
      %v1646 = vadd.f32 %v1405, %v1645
      %v1647 = vpop.f32.mrf.mxu0
      %1648 = vmatprep.mubr.bf16.mxu0 %v897
      %1649 = vmatmul.mubr.bf16.gmra.mxu0 %v974
      %v1650 = vpop.f32.mrf.mxu0
      %v1651 = vadd.f32 %v1410, %v1650
      %v1652 = vpop.f32.mrf.mxu0
      %v1653 = vpop.f32.mrf.mxu0
      %v1654 = vadd.f32 %v1413, %v1653
      %v1655 = vpop.f32.mrf.mxu0
      %1656 = vmatprep.mubr.bf16.mxu0 %v898
      %1657 = vmatmul.mubr.bf16.gmra.mxu0 %v975
      %v1658 = vpop.f32.mrf.mxu0
      %v1659 = vadd.f32 %v1418, %v1658
      %v1660 = vpop.f32.mrf.mxu0
      %v1661 = vpop.f32.mrf.mxu0
      %v1662 = vadd.f32 %v1421, %v1661
      %v1663 = vpop.f32.mrf.mxu0
      %1664 = vmatprep.mubr.bf16.mxu0 %v899
      %1665 = vmatmul.mubr.bf16.gmra.mxu0 %v976
      %v1666 = vpop.f32.mrf.mxu0
      %v1667 = vadd.f32 %v1426, %v1666
      %v1668 = vpop.f32.mrf.mxu0
      %v1669 = vpop.f32.mrf.mxu0
      %v1670 = vadd.f32 %v1429, %v1669
      %v1671 = vpop.f32.mrf.mxu0
      %1672 = vmatprep.mubr.bf16.mxu0 %v900
      %1673 = vmatmul.mubr.bf16.gmra.mxu0 %v977
      %v1674 = vpop.f32.mrf.mxu0
      %v1675 = vadd.f32 %v1434, %v1674
      %v1676 = vpop.f32.mrf.mxu0
      %v1677 = vpop.f32.mrf.mxu0
      %v1678 = vadd.f32 %v1437, %v1677
      %v1679 = vpop.f32.mrf.mxu0
      %1680 = vmatprep.mubr.bf16.mxu0 %v901
      %1681 = vmatmul.mubr.bf16.gmra.mxu0 %v978
      %v1682 = vpop.f32.mrf.mxu0
      %v1683 = vadd.f32 %v1442, %v1682
      %v1684 = vpop.f32.mrf.mxu0
      %v1685 = vpop.f32.mrf.mxu0
      %v1686 = vadd.f32 %v1445, %v1685
      %v1687 = vpop.f32.mrf.mxu0
      %1688 = vmatprep.mubr.bf16.mxu0 %v902
      %1689 = vmatmul.mubr.bf16.gmra.mxu0 %v979
      %v1690 = vpop.f32.mrf.mxu0
      %v1691 = vadd.f32 %v1450, %v1690
      %v1692 = vpop.f32.mrf.mxu0
      %v1693 = vpop.f32.mrf.mxu0
      %v1694 = vadd.f32 %v1453, %v1693
      %v1695 = vpop.f32.mrf.mxu0
      %1696 = vmatprep.mubr.bf16.mxu0 %v903
      %1697 = vmatmul.mubr.bf16.gmra.mxu0 %v980
      %v1698 = vpop.f32.mrf.mxu0
      %v1699 = vadd.f32 %v1458, %v1698
      %v1700 = vpop.f32.mrf.mxu0
      %v1701 = vpop.f32.mrf.mxu0
      %v1702 = vadd.f32 %v1461, %v1701
      %v1703 = vpop.f32.mrf.mxu0
      %1704 = vdwg.mxu0
      %1705 = vmatprep.subr.bf16.mxu0 0
      %1706 = vmatpush1.bf16.msra.mxu0 %v1583
      %1707 = vmatprep.subr.bf16.mxu0 0
      %1708 = vmatpush1.bf16.msra.mxu0 %v1582
      %1709 = vmatprep.subr.bf16.mxu0 0
      %1710 = vmatpush1.bf16.msra.mxu0 %v1581
      %1711 = vmatprep.subr.bf16.mxu0 0
      %1712 = vmatpush1.bf16.msra.mxu0 %v1580
      %1713 = vmatprep.subr.bf16.mxu0 0
      %1714 = vmatpush1.bf16.msra.mxu0 %v1579
      %1715 = vmatprep.subr.bf16.mxu0 0
      %1716 = vmatpush1.bf16.msra.mxu0 %v1578
      %1717 = vmatprep.subr.bf16.mxu0 0
      %1718 = vmatpush1.bf16.msra.mxu0 %v1577
      %1719 = vmatprep.subr.bf16.mxu0 0
      %1720 = vmatpush1.bf16.msra.mxu0 %v1576
      %1721 = vmatprep.subr.bf16.mxu0 0
      %1722 = vmatpush2.bf16.msra.mxu0 0
      %1723 = vmatprep.subr.bf16.mxu0 0
      %1724 = vmatpush2.bf16.msra.mxu0 0
      %1725 = vmatprep.subr.bf16.mxu0 0
      %1726 = vmatpush2.bf16.msra.mxu0 0
      %1727 = vmatprep.subr.bf16.mxu0 0
      %1728 = vmatpush2.bf16.msra.mxu0 0
      %1729 = vmatprep.subr.bf16.mxu0 0
      %1730 = vmatpush2.bf16.msra.mxu0 0
      %1731 = vmatprep.subr.bf16.mxu0 0
      %1732 = vmatpush2.bf16.msra.mxu0 0
      %1733 = vmatprep.subr.bf16.mxu0 0
      %1734 = vmatpush2.bf16.msra.mxu0 0
      %1735 = vmatprep.subr.bf16.mxu0 0
      %1736 = vmatpush2.bf16.msra.mxu0 0
      %1737 = vmatprep.mubr.bf16.mxu0 0
      %1738 = vmatmul.mubr.bf16.gmra.mxu0 %v1008
      %v1739 = vpop.f32.mrf.mxu0
      %v1740 = vadd.f32 %v1643, %v1739
      %v1741 = vpop.f32.mrf.mxu0
      %v1742 = vpop.f32.mrf.mxu0
      %v1743 = vadd.f32 %v1646, %v1742
      %v1744 = vpop.f32.mrf.mxu0
      %1745 = vmatprep.mubr.bf16.mxu0 0
      %1746 = vmatmul.mubr.bf16.gmra.mxu0 %v1009
      %v1747 = vpop.f32.mrf.mxu0
      %v1748 = vadd.f32 %v1651, %v1747
      %v1749 = vpop.f32.mrf.mxu0
      %v1750 = vpop.f32.mrf.mxu0
      %v1751 = vadd.f32 %v1654, %v1750
      %v1752 = vpop.f32.mrf.mxu0
      %1753 = vmatprep.mubr.bf16.mxu0 0
      %1754 = vmatmul.mubr.bf16.gmra.mxu0 %v1010
      %v1755 = vpop.f32.mrf.mxu0
      %v1756 = vadd.f32 %v1659, %v1755
      %v1757 = vpop.f32.mrf.mxu0
      %v1758 = vpop.f32.mrf.mxu0
      %v1759 = vadd.f32 %v1662, %v1758
      %v1760 = vpop.f32.mrf.mxu0
      %1761 = vmatprep.mubr.bf16.mxu0 0
      %1762 = vmatmul.mubr.bf16.gmra.mxu0 %v1011
      %v1763 = vpop.f32.mrf.mxu0
      %v1764 = vadd.f32 %v1667, %v1763
      %v1765 = vpop.f32.mrf.mxu0
      %v1766 = vpop.f32.mrf.mxu0
      %v1767 = vadd.f32 %v1670, %v1766
      %v1768 = vpop.f32.mrf.mxu0
      %1769 = vmatprep.mubr.bf16.mxu0 0
      %1770 = vmatmul.mubr.bf16.gmra.mxu0 %v1012
      %v1771 = vpop.f32.mrf.mxu0
      %v1772 = vadd.f32 %v1675, %v1771
      %v1773 = vpop.f32.mrf.mxu0
      %v1774 = vpop.f32.mrf.mxu0
      %v1775 = vadd.f32 %v1678, %v1774
      %v1776 = vpop.f32.mrf.mxu0
      %1777 = vmatprep.mubr.bf16.mxu0 0
      %1778 = vmatmul.mubr.bf16.gmra.mxu0 %v1013
      %v1779 = vpop.f32.mrf.mxu0
      %v1780 = vadd.f32 %v1683, %v1779
      %v1781 = vpop.f32.mrf.mxu0
      %v1782 = vpop.f32.mrf.mxu0
      %v1783 = vadd.f32 %v1686, %v1782
      %v1784 = vpop.f32.mrf.mxu0
      %1785 = vmatprep.mubr.bf16.mxu0 0
      %1786 = vmatmul.mubr.bf16.gmra.mxu0 %v1014
      %v1787 = vpop.f32.mrf.mxu0
      %v1788 = vadd.f32 %v1691, %v1787
      %v1789 = vpop.f32.mrf.mxu0
      %v1790 = vpop.f32.mrf.mxu0
      %v1791 = vadd.f32 %v1694, %v1790
      %v1792 = vpop.f32.mrf.mxu0
      %1793 = vmatprep.mubr.bf16.mxu0 0
      %1794 = vmatmul.mubr.bf16.gmra.mxu0 %v1015
      %v1795 = vpop.f32.mrf.mxu0
      %v1796 = vadd.f32 %v1699, %v1795
      %v1797 = vpop.f32.mrf.mxu0
      %v1798 = vpop.f32.mrf.mxu0
      %v1799 = vadd.f32 %v1702, %v1798
      %v1800 = vpop.f32.mrf.mxu0
      %1801 = vdwg.mxu0
      %v1803 = vshrl.u32 %v905, 16
      %v1805 = vrot.slane %v1803, 7
      %v1806 = vshll.u32 %v905, 16
      %v1808 = vor.u32 %v1805, %v1806
      %v1810 = vsel %vm972, 0, %v1808
      %v1811 = vrot.slane %v1806, 1
      %v1812 = vor.u32 %v1803, %v1811
      %v1814 = vsel %vm1007, %v1812, 0
      %s1815 = scalar_lea.vmem %s6, 384
      %v1816 = vld [vmem:[%s1815] sm:$0xf]
      %v1817 = vld [vmem:[%s1815 + $0x4] sm:$0xf]
      %v1818 = vld [vmem:[%s1815 + $0x8] sm:$0xf]
      %v1819 = vld [vmem:[%s1815 + $0xc] sm:$0xf]
      %v1820 = vld [vmem:[%s1815 + $0x10] sm:$0xf]
      %v1821 = vld [vmem:[%s1815 + $0x14] sm:$0xf]
      %v1822 = vld [vmem:[%s1815 + $0x18] sm:$0xf]
      %v1823 = vld [vmem:[%s1815 + $0x1c] sm:$0xf]
      %v1824 = vld [vmem:[%s1815 + $0x20] sm:$0xf]
      %v1825 = vld [vmem:[%s1815 + $0x24] sm:$0xf]
      %v1826 = vld [vmem:[%s1815 + $0x28] sm:$0xf]
      %v1827 = vld [vmem:[%s1815 + $0x2c] sm:$0xf]
      %v1828 = vld [vmem:[%s1815 + $0x30] sm:$0xf]
      %v1829 = vld [vmem:[%s1815 + $0x34] sm:$0xf]
      %v1830 = vld [vmem:[%s1815 + $0x38] sm:$0xf]
      %v1831 = vld [vmem:[%s1815 + $0x3c] sm:$0xf]
      %v1832 = vld [vmem:[%s1815 + $0x40] sm:$0xf]
      %v1833 = vld [vmem:[%s1815 + $0x44] sm:$0xf]
      %v1834 = vld [vmem:[%s1815 + $0x48] sm:$0xf]
      %v1835 = vld [vmem:[%s1815 + $0x4c] sm:$0xf]
      %v1836 = vld [vmem:[%s1815 + $0x50] sm:$0xf]
      %v1837 = vld [vmem:[%s1815 + $0x54] sm:$0xf]
      %v1838 = vld [vmem:[%s1815 + $0x58] sm:$0xf]
      %v1839 = vld [vmem:[%s1815 + $0x5c] sm:$0xf]
      %v1840 = vld [vmem:[%s1815 + $0x60] sm:$0xf]
      %v1841 = vld [vmem:[%s1815 + $0x64] sm:$0xf]
      %v1842 = vld [vmem:[%s1815 + $0x68] sm:$0xf]
      %v1843 = vld [vmem:[%s1815 + $0x6c] sm:$0xf]
      %v1844 = vld [vmem:[%s1815 + $0x70] sm:$0xf]
      %v1845 = vld [vmem:[%s1815 + $0x74] sm:$0xf]
      %v1846 = vld [vmem:[%s1815 + $0x78] sm:$0xf]
      %v1847 = vld [vmem:[%s1815 + $0x7c] sm:$0xf]
      %v1848 = vld [vmem:[%s1815 + $0x80] sm:$0xf]
      %v1849 = vld [vmem:[%s1815 + $0x84] sm:$0xf]
      %v1850 = vld [vmem:[%s1815 + $0x88] sm:$0xf]
      %v1851 = vld [vmem:[%s1815 + $0x8c] sm:$0xf]
      %v1852 = vld [vmem:[%s1815 + $0x90] sm:$0xf]
      %v1853 = vld [vmem:[%s1815 + $0x94] sm:$0xf]
      %v1854 = vld [vmem:[%s1815 + $0x98] sm:$0xf]
      %v1855 = vld [vmem:[%s1815 + $0x9c] sm:$0xf]
      %v1856 = vld [vmem:[%s1815 + $0xa0] sm:$0xf]
      %v1857 = vld [vmem:[%s1815 + $0xa4] sm:$0xf]
      %v1858 = vld [vmem:[%s1815 + $0xa8] sm:$0xf]
      %v1859 = vld [vmem:[%s1815 + $0xac] sm:$0xf]
      %v1860 = vld [vmem:[%s1815 + $0xb0] sm:$0xf]
      %v1861 = vld [vmem:[%s1815 + $0xb4] sm:$0xf]
      %v1862 = vld [vmem:[%s1815 + $0xb8] sm:$0xf]
      %v1863 = vld [vmem:[%s1815 + $0xbc] sm:$0xf]
      %v1912 = vunpack.c.l.b16 %v1816
      %v1913 = vunpack.c.l.b16 %v1817
      %v1914 = vunpack.c.l.b16 %v1818
      %v1915 = vunpack.c.l.b16 %v1819
      %v1916 = vunpack.c.l.b16 %v1820
      %v1917 = vunpack.c.l.b16 %v1821
      %v1918 = vunpack.c.l.b16 %v1822
      %v1919 = vunpack.c.l.b16 %v1823
      %v1920 = vunpack.c.l.b16 %v1824
      %v1921 = vunpack.c.l.b16 %v1825
      %v1922 = vunpack.c.l.b16 %v1826
      %v1923 = vunpack.c.l.b16 %v1827
      %v1924 = vunpack.c.l.b16 %v1828
      %v1925 = vunpack.c.l.b16 %v1829
      %v1926 = vunpack.c.l.b16 %v1830
      %v1927 = vunpack.c.l.b16 %v1831
      %v1928 = vunpack.c.l.b16 %v1832
      %v1929 = vunpack.c.l.b16 %v1833
      %v1930 = vunpack.c.l.b16 %v1834
      %v1931 = vunpack.c.l.b16 %v1835
      %v1932 = vunpack.c.l.b16 %v1836
      %v1933 = vunpack.c.l.b16 %v1837
      %v1934 = vunpack.c.l.b16 %v1838
      %v1935 = vunpack.c.l.b16 %v1839
      %v1936 = vunpack.c.l.b16 %v1840
      %v1937 = vunpack.c.l.b16 %v1841
      %v1938 = vunpack.c.l.b16 %v1842
      %v1939 = vunpack.c.l.b16 %v1843
      %v1940 = vunpack.c.l.b16 %v1844
      %v1941 = vunpack.c.l.b16 %v1845
      %v1942 = vunpack.c.l.b16 %v1846
      %v1943 = vunpack.c.l.b16 %v1847
      %v1944 = vunpack.c.l.b16 %v1848
      %v1945 = vunpack.c.l.b16 %v1849
      %v1946 = vunpack.c.l.b16 %v1850
      %v1947 = vunpack.c.l.b16 %v1851
      %v1948 = vunpack.c.l.b16 %v1852
      %v1949 = vunpack.c.l.b16 %v1853
      %v1950 = vunpack.c.l.b16 %v1854
      %v1951 = vunpack.c.l.b16 %v1855
      %v1952 = vunpack.c.l.b16 %v1856
      %v1953 = vunpack.c.l.b16 %v1857
      %v1954 = vunpack.c.l.b16 %v1858
      %v1955 = vunpack.c.l.b16 %v1859
      %v1956 = vunpack.c.l.b16 %v1860
      %v1957 = vunpack.c.l.b16 %v1861
      %v1958 = vunpack.c.l.b16 %v1862
      %v1959 = vunpack.c.l.b16 %v1863
      %v1960 = vpack.c.b16 %v1913, %v1912
      %v1961 = vpack.c.b16 %v1915, %v1914
      %v1962 = vpack.c.b16 %v1917, %v1916
      %v1963 = vpack.c.b16 %v1919, %v1918
      %v1964 = vpack.c.b16 %v1921, %v1920
      %v1965 = vpack.c.b16 %v1923, %v1922
      %v1966 = vpack.c.b16 %v1925, %v1924
      %v1967 = vpack.c.b16 %v1927, %v1926
      %v1968 = vpack.c.b16 %v1929, %v1928
      %v1969 = vpack.c.b16 %v1931, %v1930
      %v1970 = vpack.c.b16 %v1933, %v1932
      %v1971 = vpack.c.b16 %v1935, %v1934
      %v1972 = vpack.c.b16 %v1937, %v1936
      %v1973 = vpack.c.b16 %v1939, %v1938
      %v1974 = vpack.c.b16 %v1941, %v1940
      %v1975 = vpack.c.b16 %v1943, %v1942
      %v1976 = vpack.c.b16 %v1945, %v1944
      %v1977 = vpack.c.b16 %v1947, %v1946
      %v1978 = vpack.c.b16 %v1949, %v1948
      %v1979 = vpack.c.b16 %v1951, %v1950
      %v1980 = vpack.c.b16 %v1953, %v1952
      %v1981 = vpack.c.b16 %v1955, %v1954
      %v1982 = vpack.c.b16 %v1957, %v1956
      %v1983 = vpack.c.b16 %v1959, %v1958
      %2008 = vmatprep.subr.bf16.mxu0 0
      %2009 = vmatpush1.bf16.msra.mxu0 %v1967
      %2010 = vmatprep.subr.bf16.mxu0 0
      %2011 = vmatpush1.bf16.msra.mxu0 %v1966
      %2012 = vmatprep.subr.bf16.mxu0 0
      %2013 = vmatpush1.bf16.msra.mxu0 %v1965
      %2014 = vmatprep.subr.bf16.mxu0 0
      %2015 = vmatpush1.bf16.msra.mxu0 %v1964
      %2016 = vmatprep.subr.bf16.mxu0 0
      %2017 = vmatpush1.bf16.msra.mxu0 %v1963
      %2018 = vmatprep.subr.bf16.mxu0 0
      %2019 = vmatpush1.bf16.msra.mxu0 %v1962
      %2020 = vmatprep.subr.bf16.mxu0 0
      %2021 = vmatpush1.bf16.msra.mxu0 %v1961
      %2022 = vmatprep.subr.bf16.mxu0 0
      %2023 = vmatpush1.bf16.msra.mxu0 %v1960
      %2024 = vmatprep.subr.bf16.mxu0 0
      %2025 = vmatpush2.bf16.msra.mxu0 %v1975
      %2026 = vmatprep.subr.bf16.mxu0 0
      %2027 = vmatpush2.bf16.msra.mxu0 %v1974
      %2028 = vmatprep.subr.bf16.mxu0 0
      %2029 = vmatpush2.bf16.msra.mxu0 %v1973
      %2030 = vmatprep.subr.bf16.mxu0 0
      %2031 = vmatpush2.bf16.msra.mxu0 %v1972
      %2032 = vmatprep.subr.bf16.mxu0 0
      %2033 = vmatpush2.bf16.msra.mxu0 %v1971
      %2034 = vmatprep.subr.bf16.mxu0 0
      %2035 = vmatpush2.bf16.msra.mxu0 %v1970
      %2036 = vmatprep.subr.bf16.mxu0 0
      %2037 = vmatpush2.bf16.msra.mxu0 %v1969
      %2038 = vmatprep.subr.bf16.mxu0 0
      %2039 = vmatpush2.bf16.msra.mxu0 %v1968
      %2040 = vmatprep.mubr.bf16.mxu0 %v898
      %2041 = vmatmul.mubr.bf16.gmra.mxu0 %v975
      %v2042 = vpop.f32.mrf.mxu0
      %v2043 = vadd.f32 0.0, %v2042
      %v2044 = vpop.f32.mrf.mxu0
      %v2045 = vpop.f32.mrf.mxu0
      %v2046 = vadd.f32 0.0, %v2045
      %v2047 = vpop.f32.mrf.mxu0
      %2048 = vmatprep.mubr.bf16.mxu0 %v899
      %2049 = vmatmul.mubr.bf16.gmra.mxu0 %v976
      %v2050 = vpop.f32.mrf.mxu0
      %v2051 = vadd.f32 0.0, %v2050
      %v2052 = vpop.f32.mrf.mxu0
      %v2053 = vpop.f32.mrf.mxu0
      %v2054 = vadd.f32 0.0, %v2053
      %v2055 = vpop.f32.mrf.mxu0
      %2056 = vmatprep.mubr.bf16.mxu0 %v900
      %2057 = vmatmul.mubr.bf16.gmra.mxu0 %v977
      %v2058 = vpop.f32.mrf.mxu0
      %v2059 = vadd.f32 0.0, %v2058
      %v2060 = vpop.f32.mrf.mxu0
      %v2061 = vpop.f32.mrf.mxu0
      %v2062 = vadd.f32 0.0, %v2061
      %v2063 = vpop.f32.mrf.mxu0
      %2064 = vmatprep.mubr.bf16.mxu0 %v901
      %2065 = vmatmul.mubr.bf16.gmra.mxu0 %v978
      %v2066 = vpop.f32.mrf.mxu0
      %v2067 = vadd.f32 0.0, %v2066
      %v2068 = vpop.f32.mrf.mxu0
      %v2069 = vpop.f32.mrf.mxu0
      %v2070 = vadd.f32 0.0, %v2069
      %v2071 = vpop.f32.mrf.mxu0
      %2072 = vmatprep.mubr.bf16.mxu0 %v902
      %2073 = vmatmul.mubr.bf16.gmra.mxu0 %v979
      %v2074 = vpop.f32.mrf.mxu0
      %v2075 = vadd.f32 0.0, %v2074
      %v2076 = vpop.f32.mrf.mxu0
      %v2077 = vpop.f32.mrf.mxu0
      %v2078 = vadd.f32 0.0, %v2077
      %v2079 = vpop.f32.mrf.mxu0
      %2080 = vmatprep.mubr.bf16.mxu0 %v903
      %2081 = vmatmul.mubr.bf16.gmra.mxu0 %v980
      %v2082 = vpop.f32.mrf.mxu0
      %v2083 = vadd.f32 0.0, %v2082
      %v2084 = vpop.f32.mrf.mxu0
      %v2085 = vpop.f32.mrf.mxu0
      %v2086 = vadd.f32 0.0, %v2085
      %v2087 = vpop.f32.mrf.mxu0
      %2088 = vmatprep.mubr.bf16.mxu0 %v904
      %2089 = vmatmul.mubr.bf16.gmra.mxu0 %v1072
      %v2090 = vpop.f32.mrf.mxu0
      %v2091 = vadd.f32 0.0, %v2090
      %v2092 = vpop.f32.mrf.mxu0
      %v2093 = vpop.f32.mrf.mxu0
      %v2094 = vadd.f32 0.0, %v2093
      %v2095 = vpop.f32.mrf.mxu0
      %2096 = vmatprep.mubr.bf16.mxu0 %v905
      %2097 = vmatmul.mubr.bf16.gmra.mxu0 %v1810
      %v2098 = vpop.f32.mrf.mxu0
      %v2099 = vadd.f32 0.0, %v2098
      %v2100 = vpop.f32.mrf.mxu0
      %v2101 = vpop.f32.mrf.mxu0
      %v2102 = vadd.f32 0.0, %v2101
      %v2103 = vpop.f32.mrf.mxu0
      %2104 = vdwg.mxu0
      %2105 = vmatprep.subr.bf16.mxu0 0
      %2106 = vmatpush1.bf16.msra.mxu0 %v1983
      %2107 = vmatprep.subr.bf16.mxu0 0
      %2108 = vmatpush1.bf16.msra.mxu0 %v1982
      %2109 = vmatprep.subr.bf16.mxu0 0
      %2110 = vmatpush1.bf16.msra.mxu0 %v1981
      %2111 = vmatprep.subr.bf16.mxu0 0
      %2112 = vmatpush1.bf16.msra.mxu0 %v1980
      %2113 = vmatprep.subr.bf16.mxu0 0
      %2114 = vmatpush1.bf16.msra.mxu0 %v1979
      %2115 = vmatprep.subr.bf16.mxu0 0
      %2116 = vmatpush1.bf16.msra.mxu0 %v1978
      %2117 = vmatprep.subr.bf16.mxu0 0
      %2118 = vmatpush1.bf16.msra.mxu0 %v1977
      %2119 = vmatprep.subr.bf16.mxu0 0
      %2120 = vmatpush1.bf16.msra.mxu0 %v1976
      %2121 = vmatprep.subr.bf16.mxu0 0
      %2122 = vmatpush2.bf16.msra.mxu0 0
      %2123 = vmatprep.subr.bf16.mxu0 0
      %2124 = vmatpush2.bf16.msra.mxu0 0
      %2125 = vmatprep.subr.bf16.mxu0 0
      %2126 = vmatpush2.bf16.msra.mxu0 0
      %2127 = vmatprep.subr.bf16.mxu0 0
      %2128 = vmatpush2.bf16.msra.mxu0 0
      %2129 = vmatprep.subr.bf16.mxu0 0
      %2130 = vmatpush2.bf16.msra.mxu0 0
      %2131 = vmatprep.subr.bf16.mxu0 0
      %2132 = vmatpush2.bf16.msra.mxu0 0
      %2133 = vmatprep.subr.bf16.mxu0 0
      %2134 = vmatpush2.bf16.msra.mxu0 0
      %2135 = vmatprep.subr.bf16.mxu0 0
      %2136 = vmatpush2.bf16.msra.mxu0 0
      %2137 = vmatprep.mubr.bf16.mxu0 0
      %2138 = vmatmul.mubr.bf16.gmra.mxu0 %v1010
      %v2139 = vpop.f32.mrf.mxu0
      %v2140 = vadd.f32 %v2043, %v2139
      %v2141 = vpop.f32.mrf.mxu0
      %v2142 = vpop.f32.mrf.mxu0
      %v2143 = vadd.f32 %v2046, %v2142
      %v2144 = vpop.f32.mrf.mxu0
      %2145 = vmatprep.mubr.bf16.mxu0 0
      %2146 = vmatmul.mubr.bf16.gmra.mxu0 %v1011
      %v2147 = vpop.f32.mrf.mxu0
      %v2148 = vadd.f32 %v2051, %v2147
      %v2149 = vpop.f32.mrf.mxu0
      %v2150 = vpop.f32.mrf.mxu0
      %v2151 = vadd.f32 %v2054, %v2150
      %v2152 = vpop.f32.mrf.mxu0
      %2153 = vmatprep.mubr.bf16.mxu0 0
      %2154 = vmatmul.mubr.bf16.gmra.mxu0 %v1012
      %v2155 = vpop.f32.mrf.mxu0
      %v2156 = vadd.f32 %v2059, %v2155
      %v2157 = vpop.f32.mrf.mxu0
      %v2158 = vpop.f32.mrf.mxu0
      %v2159 = vadd.f32 %v2062, %v2158
      %v2160 = vpop.f32.mrf.mxu0
      %2161 = vmatprep.mubr.bf16.mxu0 0
      %2162 = vmatmul.mubr.bf16.gmra.mxu0 %v1013
      %v2163 = vpop.f32.mrf.mxu0
      %v2164 = vadd.f32 %v2067, %v2163
      %v2165 = vpop.f32.mrf.mxu0
      %v2166 = vpop.f32.mrf.mxu0
      %v2167 = vadd.f32 %v2070, %v2166
      %v2168 = vpop.f32.mrf.mxu0
      %2169 = vmatprep.mubr.bf16.mxu0 0
      %2170 = vmatmul.mubr.bf16.gmra.mxu0 %v1014
      %v2171 = vpop.f32.mrf.mxu0
      %v2172 = vadd.f32 %v2075, %v2171
      %v2173 = vpop.f32.mrf.mxu0
      %v2174 = vpop.f32.mrf.mxu0
      %v2175 = vadd.f32 %v2078, %v2174
      %v2176 = vpop.f32.mrf.mxu0
      %2177 = vmatprep.mubr.bf16.mxu0 0
      %2178 = vmatmul.mubr.bf16.gmra.mxu0 %v1015
      %v2179 = vpop.f32.mrf.mxu0
      %v2180 = vadd.f32 %v2083, %v2179
      %v2181 = vpop.f32.mrf.mxu0
      %v2182 = vpop.f32.mrf.mxu0
      %v2183 = vadd.f32 %v2086, %v2182
      %v2184 = vpop.f32.mrf.mxu0
      %2185 = vmatprep.mubr.bf16.mxu0 0
      %2186 = vmatmul.mubr.bf16.gmra.mxu0 %v1076
      %v2187 = vpop.f32.mrf.mxu0
      %v2188 = vadd.f32 %v2091, %v2187
      %v2189 = vpop.f32.mrf.mxu0
      %v2190 = vpop.f32.mrf.mxu0
      %v2191 = vadd.f32 %v2094, %v2190
      %v2192 = vpop.f32.mrf.mxu0
      %2193 = vmatprep.mubr.bf16.mxu0 0
      %2194 = vmatmul.mubr.bf16.gmra.mxu0 %v1814
      %v2195 = vpop.f32.mrf.mxu0
      %v2196 = vadd.f32 %v2099, %v2195
      %v2197 = vpop.f32.mrf.mxu0
      %v2198 = vpop.f32.mrf.mxu0
      %v2199 = vadd.f32 %v2102, %v2198
      %v2200 = vpop.f32.mrf.mxu0
      %2201 = vdwg.mxu0
      %v2202 = vadd.f32 %v1740, %v2140
      %v2203 = vadd.f32 %v1743, %v2143
      %v2204 = vadd.f32 %v1748, %v2148
      %v2205 = vadd.f32 %v1751, %v2151
      %v2206 = vadd.f32 %v1756, %v2156
      %v2207 = vadd.f32 %v1759, %v2159
      %v2208 = vadd.f32 %v1764, %v2164
      %v2209 = vadd.f32 %v1767, %v2167
      %v2210 = vadd.f32 %v1772, %v2172
      %v2211 = vadd.f32 %v1775, %v2175
      %v2212 = vadd.f32 %v1780, %v2180
      %v2213 = vadd.f32 %v1783, %v2183
      %v2214 = vadd.f32 %v1788, %v2188
      %v2215 = vadd.f32 %v1791, %v2191
      %v2216 = vadd.f32 %v1796, %v2196
      %v2217 = vadd.f32 %v1799, %v2199
      %v2218 = vld [vmem:[%s7] sm:$0x1]
      %v2220 = vlaneseq
      %v2221 = vshrl.u32 %v2220, 7
      %v2222 = vsub.s32 0, %v2221
      %v2223 = vrot.slane %v2218, %v2222
      %v2225 = vmul.f32 %v2202, %v2223
      %v2226 = vmul.f32 %v2203, %v2223
      %v2227 = vmul.f32 %v2204, %v2223
      %v2228 = vmul.f32 %v2205, %v2223
      %v2229 = vmul.f32 %v2206, %v2223
      %v2230 = vmul.f32 %v2207, %v2223
      %v2231 = vmul.f32 %v2208, %v2223
      %v2232 = vmul.f32 %v2209, %v2223
      %v2233 = vmul.f32 %v2210, %v2223
      %v2234 = vmul.f32 %v2211, %v2223
      %v2235 = vmul.f32 %v2212, %v2223
      %v2236 = vmul.f32 %v2213, %v2223
      %v2237 = vmul.f32 %v2214, %v2223
      %v2238 = vmul.f32 %v2215, %v2223
      %v2239 = vmul.f32 %v2216, %v2223
      %v2240 = vmul.f32 %v2217, %v2223
      %v2241 = vld [vmem:[%s8] sm:$0x1]
      %v2243 = vlaneseq
      %v2244 = vshrl.u32 %v2243, 7
      %v2245 = vsub.s32 0, %v2244
      %v2246 = vrot.slane %v2241, %v2245
      %v2248 = vadd.f32 %v2225, %v2246
      %v2249 = vadd.f32 %v2226, %v2246
      %v2250 = vadd.f32 %v2227, %v2246
      %v2251 = vadd.f32 %v2228, %v2246
      %v2252 = vadd.f32 %v2229, %v2246
      %v2253 = vadd.f32 %v2230, %v2246
      %v2254 = vadd.f32 %v2231, %v2246
      %v2255 = vadd.f32 %v2232, %v2246
      %v2256 = vadd.f32 %v2233, %v2246
      %v2257 = vadd.f32 %v2234, %v2246
      %v2258 = vadd.f32 %v2235, %v2246
      %v2259 = vadd.f32 %v2236, %v2246
      %v2260 = vadd.f32 %v2237, %v2246
      %v2261 = vadd.f32 %v2238, %v2246
      %v2262 = vadd.f32 %v2239, %v2246
      %v2263 = vadd.f32 %v2240, %v2246
      %v2264 = vmax.f32 %v2248, 0.0
      %v2265 = vmax.f32 %v2249, 0.0
      %v2266 = vmax.f32 %v2250, 0.0
      %v2267 = vmax.f32 %v2251, 0.0
      %v2268 = vmax.f32 %v2252, 0.0
      %v2269 = vmax.f32 %v2253, 0.0
      %v2270 = vmax.f32 %v2254, 0.0
      %v2271 = vmax.f32 %v2255, 0.0
      %v2272 = vmax.f32 %v2256, 0.0
      %v2273 = vmax.f32 %v2257, 0.0
      %v2274 = vmax.f32 %v2258, 0.0
      %v2275 = vmax.f32 %v2259, 0.0
      %v2276 = vmax.f32 %v2260, 0.0
      %v2277 = vmax.f32 %v2261, 0.0
      %v2278 = vmax.f32 %v2262, 0.0
      %v2279 = vmax.f32 %v2263, 0.0
      %v2280 = vpack.c.bf16 %v2265, %v2264
      %v2281 = vpack.c.bf16 %v2267, %v2266
      %v2282 = vpack.c.bf16 %v2269, %v2268
      %v2283 = vpack.c.bf16 %v2271, %v2270
      %v2284 = vpack.c.bf16 %v2273, %v2272
      %v2285 = vpack.c.bf16 %v2275, %v2274
      %v2286 = vpack.c.bf16 %v2277, %v2276
      %v2287 = vpack.c.bf16 %v2279, %v2278
      %v2288 = vld [vmem:[%s9] sm:$0xf]
      %v2289 = vld [vmem:[%s9 + $0x4] sm:$0xf]
      %v2290 = vld [vmem:[%s9 + $0x8] sm:$0xf]
      %v2291 = vld [vmem:[%s9 + $0xc] sm:$0xf]
      %v2292 = vld [vmem:[%s9 + $0x10] sm:$0xf]
      %v2293 = vld [vmem:[%s9 + $0x14] sm:$0xf]
      %v2294 = vld [vmem:[%s9 + $0x18] sm:$0xf]
      %v2295 = vld [vmem:[%s9 + $0x1c] sm:$0xf]
      %v2296 = vld [vmem:[%s9 + $0x20] sm:$0xf]
      %v2297 = vld [vmem:[%s9 + $0x24] sm:$0xf]
      %v2298 = vld [vmem:[%s9 + $0x28] sm:$0xf]
      %v2299 = vld [vmem:[%s9 + $0x2c] sm:$0xf]
      %v2300 = vld [vmem:[%s9 + $0x30] sm:$0xf]
      %v2301 = vld [vmem:[%s9 + $0x34] sm:$0xf]
      %v2302 = vld [vmem:[%s9 + $0x38] sm:$0xf]
      %v2303 = vld [vmem:[%s9 + $0x3c] sm:$0xf]
      %v2320 = vunpack.c.l.b16 %v2288
      %v2321 = vunpack.c.l.b16 %v2289
      %v2322 = vunpack.c.l.b16 %v2290
      %v2323 = vunpack.c.l.b16 %v2291
      %v2324 = vunpack.c.l.b16 %v2292
      %v2325 = vunpack.c.l.b16 %v2293
      %v2326 = vunpack.c.l.b16 %v2294
      %v2327 = vunpack.c.l.b16 %v2295
      %v2328 = vunpack.c.l.b16 %v2296
      %v2329 = vunpack.c.l.b16 %v2297
      %v2330 = vunpack.c.l.b16 %v2298
      %v2331 = vunpack.c.l.b16 %v2299
      %v2332 = vunpack.c.l.b16 %v2300
      %v2333 = vunpack.c.l.b16 %v2301
      %v2334 = vunpack.c.l.b16 %v2302
      %v2335 = vunpack.c.l.b16 %v2303
      %v2336 = vpack.c.b16 %v2321, %v2320
      %v2337 = vpack.c.b16 %v2323, %v2322
      %v2338 = vpack.c.b16 %v2325, %v2324
      %v2339 = vpack.c.b16 %v2327, %v2326
      %v2340 = vpack.c.b16 %v2329, %v2328
      %v2341 = vpack.c.b16 %v2331, %v2330
      %v2342 = vpack.c.b16 %v2333, %v2332
      %v2343 = vpack.c.b16 %v2335, %v2334
      %2352 = vmatprep.subr.bf16.mxu0 0
      %2353 = vmatpush1.bf16.msra.mxu0 %v2343
      %2354 = vmatprep.subr.bf16.mxu0 0
      %2355 = vmatpush1.bf16.msra.mxu0 %v2342
      %2356 = vmatprep.subr.bf16.mxu0 0
      %2357 = vmatpush1.bf16.msra.mxu0 %v2341
      %2358 = vmatprep.subr.bf16.mxu0 0
      %2359 = vmatpush1.bf16.msra.mxu0 %v2340
      %2360 = vmatprep.subr.bf16.mxu0 0
      %2361 = vmatpush1.bf16.msra.mxu0 %v2339
      %2362 = vmatprep.subr.bf16.mxu0 0
      %2363 = vmatpush1.bf16.msra.mxu0 %v2338
      %2364 = vmatprep.subr.bf16.mxu0 0
      %2365 = vmatpush1.bf16.msra.mxu0 %v2337
      %2366 = vmatprep.subr.bf16.mxu0 0
      %2367 = vmatpush1.bf16.msra.mxu0 %v2336
      %2368 = vmatprep.subr.bf16.mxu0 0
      %2369 = vmatpush2.bf16.msra.mxu0 0
      %2370 = vmatprep.subr.bf16.mxu0 0
      %2371 = vmatpush2.bf16.msra.mxu0 0
      %2372 = vmatprep.subr.bf16.mxu0 0
      %2373 = vmatpush2.bf16.msra.mxu0 0
      %2374 = vmatprep.subr.bf16.mxu0 0
      %2375 = vmatpush2.bf16.msra.mxu0 0
      %2376 = vmatprep.subr.bf16.mxu0 0
      %2377 = vmatpush2.bf16.msra.mxu0 0
      %2378 = vmatprep.subr.bf16.mxu0 0
      %2379 = vmatpush2.bf16.msra.mxu0 0
      %2380 = vmatprep.subr.bf16.mxu0 0
      %2381 = vmatpush2.bf16.msra.mxu0 0
      %2382 = vmatprep.subr.bf16.mxu0 0
      %2383 = vmatpush2.bf16.msra.mxu0 0
      %2384 = vmatprep.mubr.bf16.mxu0 0
      %2385 = vmatmul.mubr.bf16.gmra.mxu0 %v2280
      %v2386 = vpop.f32.mrf.mxu0
      %v2387 = vadd.f32 0.0, %v2386
      %v2388 = vpop.f32.mrf.mxu0
      %v2389 = vpop.f32.mrf.mxu0
      %v2390 = vadd.f32 0.0, %v2389
      %v2391 = vpop.f32.mrf.mxu0
      %2392 = vmatprep.mubr.bf16.mxu0 0
      %2393 = vmatmul.mubr.bf16.gmra.mxu0 %v2281
      %v2394 = vpop.f32.mrf.mxu0
      %v2395 = vadd.f32 0.0, %v2394
      %v2396 = vpop.f32.mrf.mxu0
      %v2397 = vpop.f32.mrf.mxu0
      %v2398 = vadd.f32 0.0, %v2397
      %v2399 = vpop.f32.mrf.mxu0
      %2400 = vmatprep.mubr.bf16.mxu0 0
      %2401 = vmatmul.mubr.bf16.gmra.mxu0 %v2282
      %v2402 = vpop.f32.mrf.mxu0
      %v2403 = vadd.f32 0.0, %v2402
      %v2404 = vpop.f32.mrf.mxu0
      %v2405 = vpop.f32.mrf.mxu0
      %v2406 = vadd.f32 0.0, %v2405
      %v2407 = vpop.f32.mrf.mxu0
      %2408 = vmatprep.mubr.bf16.mxu0 0
      %2409 = vmatmul.mubr.bf16.gmra.mxu0 %v2283
      %v2410 = vpop.f32.mrf.mxu0
      %v2411 = vadd.f32 0.0, %v2410
      %v2412 = vpop.f32.mrf.mxu0
      %v2413 = vpop.f32.mrf.mxu0
      %v2414 = vadd.f32 0.0, %v2413
      %v2415 = vpop.f32.mrf.mxu0
      %2416 = vmatprep.mubr.bf16.mxu0 0
      %2417 = vmatmul.mubr.bf16.gmra.mxu0 %v2284
      %v2418 = vpop.f32.mrf.mxu0
      %v2419 = vadd.f32 0.0, %v2418
      %v2420 = vpop.f32.mrf.mxu0
      %v2421 = vpop.f32.mrf.mxu0
      %v2422 = vadd.f32 0.0, %v2421
      %v2423 = vpop.f32.mrf.mxu0
      %2424 = vmatprep.mubr.bf16.mxu0 0
      %2425 = vmatmul.mubr.bf16.gmra.mxu0 %v2285
      %v2426 = vpop.f32.mrf.mxu0
      %v2427 = vadd.f32 0.0, %v2426
      %v2428 = vpop.f32.mrf.mxu0
      %v2429 = vpop.f32.mrf.mxu0
      %v2430 = vadd.f32 0.0, %v2429
      %v2431 = vpop.f32.mrf.mxu0
      %2432 = vmatprep.mubr.bf16.mxu0 0
      %2433 = vmatmul.mubr.bf16.gmra.mxu0 %v2286
      %v2434 = vpop.f32.mrf.mxu0
      %v2435 = vadd.f32 0.0, %v2434
      %v2436 = vpop.f32.mrf.mxu0
      %v2437 = vpop.f32.mrf.mxu0
      %v2438 = vadd.f32 0.0, %v2437
      %v2439 = vpop.f32.mrf.mxu0
      %2440 = vmatprep.mubr.bf16.mxu0 0
      %2441 = vmatmul.mubr.bf16.gmra.mxu0 %v2287
      %v2442 = vpop.f32.mrf.mxu0
      %v2443 = vadd.f32 0.0, %v2442
      %v2444 = vpop.f32.mrf.mxu0
      %v2445 = vpop.f32.mrf.mxu0
      %v2446 = vadd.f32 0.0, %v2445
      %v2447 = vpop.f32.mrf.mxu0
      %2448 = vdwg.mxu0
      %v2449 = vld [vmem:[%s10] sm:$0x1]
      %v2451 = vlaneseq
      %v2452 = vshrl.u32 %v2451, 7
      %v2453 = vsub.s32 0, %v2452
      %v2454 = vrot.slane %v2449, %v2453
      %v2456 = vmul.f32 %v2387, %v2454
      %v2457 = vmul.f32 %v2390, %v2454
      %v2458 = vmul.f32 %v2395, %v2454
      %v2459 = vmul.f32 %v2398, %v2454
      %v2460 = vmul.f32 %v2403, %v2454
      %v2461 = vmul.f32 %v2406, %v2454
      %v2462 = vmul.f32 %v2411, %v2454
      %v2463 = vmul.f32 %v2414, %v2454
      %v2464 = vmul.f32 %v2419, %v2454
      %v2465 = vmul.f32 %v2422, %v2454
      %v2466 = vmul.f32 %v2427, %v2454
      %v2467 = vmul.f32 %v2430, %v2454
      %v2468 = vmul.f32 %v2435, %v2454
      %v2469 = vmul.f32 %v2438, %v2454
      %v2470 = vmul.f32 %v2443, %v2454
      %v2471 = vmul.f32 %v2446, %v2454
      %v2472 = vld [vmem:[%s11] sm:$0x1]
      %v2474 = vlaneseq
      %v2475 = vshrl.u32 %v2474, 7
      %v2476 = vsub.s32 0, %v2475
      %v2477 = vrot.slane %v2472, %v2476
      %v2479 = vadd.f32 %v2456, %v2477
      %v2480 = vadd.f32 %v2457, %v2477
      %v2481 = vadd.f32 %v2458, %v2477
      %v2482 = vadd.f32 %v2459, %v2477
      %v2483 = vadd.f32 %v2460, %v2477
      %v2484 = vadd.f32 %v2461, %v2477
      %v2485 = vadd.f32 %v2462, %v2477
      %v2486 = vadd.f32 %v2463, %v2477
      %v2487 = vadd.f32 %v2464, %v2477
      %v2488 = vadd.f32 %v2465, %v2477
      %v2489 = vadd.f32 %v2466, %v2477
      %v2490 = vadd.f32 %v2467, %v2477
      %v2491 = vadd.f32 %v2468, %v2477
      %v2492 = vadd.f32 %v2469, %v2477
      %v2493 = vadd.f32 %v2470, %v2477
      %v2494 = vadd.f32 %v2471, %v2477
      %v2495 = vadd.f32 %v2479, %v585
      %v2496 = vadd.f32 %v2480, %v586
      %v2497 = vadd.f32 %v2481, %v587
      %v2498 = vadd.f32 %v2482, %v588
      %v2499 = vadd.f32 %v2483, %v589
      %v2500 = vadd.f32 %v2484, %v590
      %v2501 = vadd.f32 %v2485, %v591
      %v2502 = vadd.f32 %v2486, %v592
      %v2503 = vadd.f32 %v2487, %v593
      %v2504 = vadd.f32 %v2488, %v594
      %v2505 = vadd.f32 %v2489, %v595
      %v2506 = vadd.f32 %v2490, %v596
      %v2507 = vadd.f32 %v2491, %v597
      %v2508 = vadd.f32 %v2492, %v598
      %v2509 = vadd.f32 %v2493, %v599
      %v2510 = vadd.f32 %v2494, %v600
      %v2511 = vmax.f32 %v2495, 0.0
      %v2512 = vmax.f32 %v2496, 0.0
      %v2513 = vmax.f32 %v2497, 0.0
      %v2514 = vmax.f32 %v2498, 0.0
      %v2515 = vmax.f32 %v2499, 0.0
      %v2516 = vmax.f32 %v2500, 0.0
      %v2517 = vmax.f32 %v2501, 0.0
      %v2518 = vmax.f32 %v2502, 0.0
      %v2519 = vmax.f32 %v2503, 0.0
      %v2520 = vmax.f32 %v2504, 0.0
      %v2521 = vmax.f32 %v2505, 0.0
      %v2522 = vmax.f32 %v2506, 0.0
      %v2523 = vmax.f32 %v2507, 0.0
      %v2524 = vmax.f32 %v2508, 0.0
      %v2525 = vmax.f32 %v2509, 0.0
      %v2526 = vmax.f32 %v2510, 0.0
      %2527 = vst [vmem:[%s580] sm:$0xff] %v2511
      %2528 = vst [vmem:[%s580 + $0x8] sm:$0xff] %v2512
      %2529 = vst [vmem:[%s580 + $0x10] sm:$0xff] %v2513
      %2530 = vst [vmem:[%s580 + $0x18] sm:$0xff] %v2514
      %2531 = vst [vmem:[%s580 + $0x20] sm:$0xff] %v2515
      %2532 = vst [vmem:[%s580 + $0x28] sm:$0xff] %v2516
      %2533 = vst [vmem:[%s580 + $0x30] sm:$0xff] %v2517
      %2534 = vst [vmem:[%s580 + $0x38] sm:$0xff] %v2518
      %2535 = vst [vmem:[%s580 + $0x40] sm:$0xff] %v2519
      %2536 = vst [vmem:[%s580 + $0x48] sm:$0xff] %v2520
      %2537 = vst [vmem:[%s580 + $0x50] sm:$0xff] %v2521
      %2538 = vst [vmem:[%s580 + $0x58] sm:$0xff] %v2522
      %2539 = vst [vmem:[%s580 + $0x60] sm:$0xff] %v2523
      %2540 = vst [vmem:[%s580 + $0x68] sm:$0xff] %v2524
      %2541 = vst [vmem:[%s580 + $0x70] sm:$0xff] %v2525
      %2542 = vst [vmem:[%s580 + $0x78] sm:$0xff] %v2526
      %s2543 = smul.u32 8, %s28
      %p2544 = scmp.lt.s32.totalorder %s27, 1
      %s2545 = scalar_select %p2544, %s27, 1
      %p2546 = scmp.lt.s32.totalorder %s2543, 15
      %s2547 = scalar_select %p2546, %s2543, 15
      %s2548 = smul.addr %s2547, 2
      %s2549 = smul.addr %s2545, 32
      %s2550 = sadd.s32 %s2548, %s2549
      %s2551 = smul.addr %s2550, 8
      %s2552 = scalar_lea.vmem %s12, %s2551
      // Predicated region
      $region69: #{decoder_bottleneck.1} parent=67 // pred_check
        %p2553 = pneg %p344
      $region70: #{decoder_bottleneck.1} parent=67 // pred_check_branch
        %2555 = sbr.rel (%p2553) target = $region72
      $region71: #{decoder_bottleneck.1} parent=67 // pred_region
        %s2556 = smul.u32 8, %s28
      $region72: #{decoder_bottleneck.1} parent=67 // pred_fallthru
        _
    $region68: #{decoder_bottleneck.1} parent=5 // pred_fallthru
      _
    %p2557 = scmp.le.s32.totalorder 2, %s18
    // Predicated region
    $region73: #{decoder_bottleneck.1} parent=5 // pred_check
      %p2558 = pneg %p2557
    $region74: #{decoder_bottleneck.1} parent=5 // pred_check_branch
      %2560 = sbr.rel (%p2558) target = $region76
    $region75: #{decoder_bottleneck.1} parent=5 // pred_region
      %s2561 = ssub.s32 %s18, 2
      // Predicated region
      $region77: #{decoder_bottleneck.1} parent=75 // pred_check
        %p2562 = pneg %p350
      $region78: #{decoder_bottleneck.1} parent=75 // pred_check_branch
        %2564 = sbr.rel (%p2562) target = $region80
      $region79: #{decoder_bottleneck.1} parent=75 // pred_region
        %s2565 = smul.u32 8, %s30
        %p2566 = scmp.lt.s32.totalorder %s29, 1
        %s2567 = scalar_select %p2566, %s29, 1
        %p2568 = scmp.lt.s32.totalorder %s2565, 15
        %s2569 = scalar_select %p2568, %s2565, 15
        %s2570 = smul.addr %s2569, 2
        %s2571 = smul.addr %s2567, 32
        %s2572 = sadd.s32 %s2570, %s2571
        %s2573 = smul.addr %s2572, 8
        %s2574 = scalar_lea.vmem %s12, %s2573
      $region80: #{decoder_bottleneck.1} parent=75 // pred_fallthru
        _
    $region76: #{decoder_bottleneck.1} parent=5 // pred_fallthru
      _
  $region6: #{decoder_bottleneck.1} parent=0 // loop_footer
    %s22 = sadd.s32 1, %s18
  $region7: #{decoder_bottleneck.1} parent=0 // loop_footer_branch
    %17 = sbr.rel target = $region3
  $region8: #{decoder_bottleneck.1} parent=0 // loop_exit
    _

</llo_original>
